<compile_context>
chip_gen: v7x
topology: tpu7x:2x2x1
jax: 0.10.0
libtpu: 0.0.40
codegen_flags: <defaults>
</compile_context>

<pallas_src>
import jax
import jax.numpy as jnp
from jax.experimental import pallas as pl
from jax.experimental.pallas import tpu as pltpu


def _round_up(x, m):
    return (x + m - 1) // m * m


# ---------------------------------------------------------------------------
# Pallas kernel: one grid step == (one batch block) x (one chunk of TL steps)
# ---------------------------------------------------------------------------
def _char_decoder_kernel(
    pg_ref,       # (TL, TB, 4H)  pre-gates  x@W_ih^T + b  (f32, lane-dense)
    whh_ref,      # (H, 4H)       W_hh^T (bf16 or f32)
    wproj_ref,    # (H, Vp)       W_out^T (bf16 or f32; vocab padded to 128)
    bproj_ref,    # (1, Vp)       b_out (f32, padded)
    h0_ref,       # (1, TB, H)    initial hidden (f32)
    c0_ref,       # (1, TB, H)    initial cell   (f32)
    scores_ref,   # (TL, TB, Vp)  scores for this block (f32)
    hn_ref,       # (1, TB, H)    final hidden (resident across time chunks)
    cn_ref,       # (1, TB, H)    final cell   (resident across time chunks)
    hseq_sc,      # VMEM (TL*TB, H) per-step hidden states (f32)
):
    c_idx = pl.program_id(1)          # time-chunk index ("arbitrary" axis)
    TL, TB, _ = pg_ref.shape
    H = whh_ref.shape[0]

    # Initialize the carried state from the provided initial state on the
    # first time chunk of each batch block.  hn/cn blocks are resident across
    # the time axis, so they double as the carry (single HBM writeback).
    @pl.when(c_idx == 0)
    def _():
        hn_ref[...] = h0_ref[...]
        cn_ref[...] = c0_ref[...]

    whh = whh_ref[...]                # hoisted out of the time loop
    mm_dtype = whh.dtype

    def step(t, carry):
        h, c = carry                                  # (TB, H) f32 each
        # Only the recurrent matmul stays on the serial path; the input
        # projection + bias were fused into the gather table in the wrapper.
        gates = pg_ref[t] + jnp.dot(
            h.astype(mm_dtype), whh, preferred_element_type=jnp.float32
        )                                             # (TB, 4H) f32

        # One sigmoid pass over the whole gates vreg, tanh only on g slice.
        sg = jax.nn.sigmoid(gates)
        i_g = sg[:, 0 * H:1 * H]
        f_g = sg[:, 1 * H:2 * H]
        o_g = sg[:, 3 * H:4 * H]
        g_g = jnp.tanh(gates[:, 2 * H:3 * H])

        c_new = f_g * c + i_g * g_g
        h_new = o_g * jnp.tanh(c_new)

        # Stash h_t for the batched output projection after the loop.
        row = pl.multiple_of(t * TB, TB)
        hseq_sc[pl.ds(row, TB), :] = h_new
        return (h_new, c_new)

    h_fin, c_fin = jax.lax.fori_loop(
        0, TL, step, (hn_ref[0], cn_ref[0]), unroll=min(TL, 8)
    )

    hn_ref[0] = h_fin
    cn_ref[0] = c_fin

    # char_output_projection hoisted out of the recurrence: one big matmul
    # with M = TL*TB rows (bf16 operands, f32 accumulate) + bias.
    hs = hseq_sc[...].astype(mm_dtype)
    scores = (
        jnp.dot(hs, wproj_ref[...], preferred_element_type=jnp.float32)
        + bproj_ref[...]
    )
    scores_ref[...] = scores.reshape(scores_ref.shape).astype(scores_ref.dtype)


# ---------------------------------------------------------------------------
# Wrapper: embedding/input-projection fusion (glue) + padding + pallas_call
# ---------------------------------------------------------------------------
def char_decoder_forward(
    input_ids, dec_hidden, params, *, time_chunk=None, batch_block=256,
    use_bf16=True,
):
    """input_ids: (L, B) int32; dec_hidden: (h0, c0) each (1, B, H)."""
    emb = params["embedding"]          # (Vocab, E)
    w_ih_t = params["w_ih_t"]          # (E, 4H)
    w_hh_t = params["w_hh_t"]          # (H, 4H)
    b_lstm = params["b_lstm"]          # (1, 4H)
    w_proj_t = params["w_proj_t"]      # (H, V)
    b_proj = params["b_proj"]          # (1, V)

    L, B = input_ids.shape
    H = w_hh_t.shape[0]
    G = 4 * H
    V = w_proj_t.shape[1]
    h0, c0 = dec_hidden

    mm_dtype = jnp.bfloat16 if use_bf16 else jnp.float32

    # Layout padding / tiling:
    #   batch -> multiple of 8 (f32 sublane tile) and of the batch block TB
    #   vocab -> multiple of 128 (lane tile; lane-dense scores stores)
    Bp = _round_up(B, 8)
    TB = min(Bp, _round_up(batch_block, 8))
    Bp = _round_up(Bp, TB)
    Vp = _round_up(V, 128)

    # Time chunking: TL timesteps per grid step, budgeted against VMEM
    # (headroom below v7x's 64 MiB physical VMEM).
    if time_chunk is None:
        budget = 40 * (1 << 20)
        TL = 1
        for cand in range(L, 0, -1):
            if L % cand:
                continue
            blk = 4 * (2 * cand * TB * G + 2 * cand * TB * Vp + cand * TB * H)
            if blk <= budget:
                TL = cand
                break
    else:
        TL = time_chunk
        assert L % TL == 0, "time_chunk must divide L"
    num_chunks = L // TL
    num_bblocks = Bp // TB

    # Glue: fuse the input projection + LSTM bias into the embedding table.
    #   emb[ids] @ W_ih^T + b  ==  (emb @ W_ih^T + b)[ids]
    # This removes the per-step input matmul and bias broadcast from the
    # kernel's serial recurrence and makes the streamed input lane-dense (4H).
    gate_table = emb @ w_ih_t + b_lstm                 # (Vocab, 4H) f32
    pre_gates = jnp.take(gate_table, input_ids, axis=0)  # (L, B, 4H) f32

    if Bp != B:
        pre_gates = jnp.pad(pre_gates, ((0, 0), (0, Bp - B), (0, 0)))
        h0 = jnp.pad(h0, ((0, 0), (0, Bp - B), (0, 0)))
        c0 = jnp.pad(c0, ((0, 0), (0, Bp - B), (0, 0)))
    if Vp != V:
        w_proj_t = jnp.pad(w_proj_t, ((0, 0), (0, Vp - V)))
        b_proj = jnp.pad(b_proj, ((0, 0), (0, Vp - V)))

    # bf16 MXU operands (f32 accumulation via preferred_element_type).
    w_hh_mm = w_hh_t.astype(mm_dtype)
    w_proj_mm = w_proj_t.astype(mm_dtype)

    # VMEM budget estimate -> explicit scoped limit (clamped to v7x physical).
    mm_bytes = jnp.dtype(mm_dtype).itemsize
    est = (
        2 * TL * TB * G * 4          # double-buffered pre-gates blocks
        + 2 * TL * TB * Vp * 4       # double-buffered scores blocks
        + TL * TB * H * 4            # hseq scratch
        + (H * G + H * Vp) * mm_bytes
        + (G + Vp + 6 * TB * H) * 4
    )
    vmem_limit = int(min(64 * (1 << 20), max(32 * (1 << 20), 2 * est)))

    grid_spec = pltpu.PrefetchScalarGridSpec(
        num_scalar_prefetch=0,
        grid=(num_bblocks, num_chunks),   # (batch parallel, time arbitrary)
        in_specs=[
            pl.BlockSpec((TL, TB, G), lambda b, c: (c, b, 0)),   # pre-gates
            pl.BlockSpec((H, G), lambda b, c: (0, 0)),           # W_hh^T
            pl.BlockSpec((H, Vp), lambda b, c: (0, 0)),          # W_out^T
            pl.BlockSpec((1, Vp), lambda b, c: (0, 0)),          # b_out
            pl.BlockSpec((1, TB, H), lambda b, c: (0, b, 0)),    # h0
            pl.BlockSpec((1, TB, H), lambda b, c: (0, b, 0)),    # c0
        ],
        out_specs=[
            pl.BlockSpec((TL, TB, Vp), lambda b, c: (c, b, 0)),  # scores
            pl.BlockSpec((1, TB, H), lambda b, c: (0, b, 0)),    # h_n (carry)
            pl.BlockSpec((1, TB, H), lambda b, c: (0, b, 0)),    # c_n (carry)
        ],
        scratch_shapes=[
            pltpu.VMEM((TL * TB, H), jnp.float32),               # per-step h_t
        ],
    )

    scores_p, h_n_p, c_n_p = pl.pallas_call(
        _char_decoder_kernel,
        out_shape=(
            jax.ShapeDtypeStruct((L, Bp, Vp), jnp.float32),
            jax.ShapeDtypeStruct((1, Bp, H), jnp.float32),
            jax.ShapeDtypeStruct((1, Bp, H), jnp.float32),
        ),
        grid_spec=grid_spec,
        compiler_params=pltpu.CompilerParams(
            dimension_semantics=("parallel", "arbitrary"),
            vmem_limit_bytes=vmem_limit,
        ),
    )(pre_gates, w_hh_mm, w_proj_mm, b_proj, h0, c0)

    # Strip layout padding (cheap slices in XLA).
    scores = scores_p[:, :B, :V]
    h_n = h_n_p[:, :B, :]
    c_n = c_n_p[:, :B, :]
    return scores, (h_n, c_n)


# ---------------------------------------------------------------------------
# Pure-JAX reference (same math & same bf16 casts, lax.scan) for correctness
# ---------------------------------------------------------------------------
def char_decoder_ref(input_ids, dec_hidden, params, *, use_bf16=True):
    mm = jnp.bfloat16 if use_bf16 else jnp.float32
    x_emb = jnp.take(params["embedding"], input_ids, axis=0)
    h0, c0 = dec_hidden
    H = params["w_hh_t"].shape[0]
    w_hh = params["w_hh_t"].astype(mm)
    w_proj = params["w_proj_t"].astype(mm)

    def step(carry, x_t):
        h, c = carry
        gates = (
            x_t @ params["w_ih_t"] + params["b_lstm"]
            + jnp.dot(h.astype(mm), w_hh, preferred_element_type=jnp.float32)
        )
        i, f, g, o = (gates[:, k * H:(k + 1) * H] for k in range(4))
        i, f, g, o = jax.nn.sigmoid(i), jax.nn.sigmoid(f), jnp.tanh(g), jax.nn.sigmoid(o)
        c = f * c + i * g
        h = o * jnp.tanh(c)
        s = jnp.dot(h.astype(mm), w_proj, preferred_element_type=jnp.float32) \
            + params["b_proj"]
        return (h, c), s

    (h_n, c_n), scores = jax.lax.scan(step, (h0[0], c0[0]), x_emb)
    return scores, (h_n[None], c_n[None])


# ---------------------------------------------------------------------------
# Deterministic parameter init (shapes from CharDecoder.__init__)
# ---------------------------------------------------------------------------
def make_params(key, vocab_size, char_embedding_size, hidden_size, pad_idx):
    ks = jax.random.split(key, 7)
    H, E, V = hidden_size, char_embedding_size, vocab_size
    lstm_r = 1.0 / jnp.sqrt(H)
    lin_r = 1.0 / jnp.sqrt(H)

    emb = jax.random.normal(ks[0], (V, E), jnp.float32)
    emb = emb.at[pad_idx].set(0.0)  # padding_idx row zeroed (as in nn.Embedding)

    w_ih = jax.random.uniform(ks[1], (4 * H, E), jnp.float32, -lstm_r, lstm_r)
    w_hh = jax.random.uniform(ks[2], (4 * H, H), jnp.float32, -lstm_r, lstm_r)
    b_ih = jax.random.uniform(ks[3], (4 * H,), jnp.float32, -lstm_r, lstm_r)
    b_hh = jax.random.uniform(ks[4], (4 * H,), jnp.float32, -lstm_r, lstm_r)
    w_proj = jax.random.uniform(ks[5], (V, H), jnp.float32, -lin_r, lin_r)
    b_proj = jax.random.uniform(ks[6], (V,), jnp.float32, -lin_r, lin_r)

    return {
        "embedding": emb,
        "w_ih_t": w_ih.T,                       # (E, 4H)
        "w_hh_t": w_hh.T,                       # (H, 4H)
        "b_lstm": (b_ih + b_hh)[None, :],       # (1, 4H)
        "w_proj_t": w_proj.T,                   # (H, V)
        "b_proj": b_proj[None, :],              # (1, V)
    }


if __name__ == "__main__":
    # Small shapes consistent with the module's forward():
    L, B = 8, 4          # (length, batch) character sequence
    H = 32               # hidden_size
    E = 50               # char_embedding_size (module default)
    V = 30               # len(target_vocab.char2id)
    PAD = 0              # target_vocab.char2id['<pad>']

    key = jax.random.PRNGKey(0)
    k_ids, k_h, k_c, k_p = jax.random.split(key, 4)

    input_ids = jax.random.randint(k_ids, (L, B), 0, V, dtype=jnp.int32)
    h0 = jax.random.normal(k_h, (1, B, H), jnp.float32)
    c0 = jax.random.normal(k_c, (1, B, H), jnp.float32)
    params = make_params(k_p, V, E, H, PAD)

    scores, (h_n, c_n) = char_decoder_forward(input_ids, (h0, c0), params)
    jax.block_until_ready((scores, h_n, c_n))

    # Verify against pure-JAX reference (same bf16 casting, f32 accumulation).
    scores_r, (h_r, c_r) = char_decoder_ref(input_ids, (h0, c0), params)
    assert scores.shape == (L, B, V)
    assert h_n.shape == (1, B, H) and c_n.shape == (1, B, H)
    assert jnp.allclose(scores, scores_r, atol=5e-3, rtol=5e-3)
    assert jnp.allclose(h_n, h_r, atol=5e-3, rtol=5e-3)
    assert jnp.allclose(c_n, c_r, atol=5e-3, rtol=5e-3)

    print("KERNEL_OK")
</pallas_src>

<mosaic_0001>
module attributes {stable_mosaic.version = 11 : i64} {
  func.func @_char_decoder_kernel(%arg0: i32, %arg1: i32, %arg2: memref<8x8x128xf32, #tpu.memory_space<vmem>>, %arg3: memref<32x128xbf16, #tpu.memory_space<vmem>>, %arg4: memref<32x128xbf16, #tpu.memory_space<vmem>>, %arg5: memref<1x128xf32, #tpu.memory_space<vmem>>, %arg6: memref<1x8x32xf32, #tpu.memory_space<vmem>>, %arg7: memref<1x8x32xf32, #tpu.memory_space<vmem>>, %arg8: memref<8x8x128xf32, #tpu.memory_space<vmem>>, %arg9: memref<1x8x32xf32, #tpu.memory_space<vmem>>, %arg10: memref<1x8x32xf32, #tpu.memory_space<vmem>>, %arg11: memref<64x32xf32, #tpu.memory_space<vmem>>) attributes {dimension_semantics = [#tpu.dimension_semantics<parallel>, #tpu.dimension_semantics<arbitrary>], iteration_bounds = array<i64: 1, 1>, scalar_prefetch = 0 : i64, scratch_operands = 1 : i64, tpu.core_type = #tpu.core_type<tc>, window_params = [{transform_indices = @transform_0, window_bounds = array<i64: 8, 8, 128>}, {pipeline_mode = #tpu.pipeline_mode<synchronous>, transform_indices = @transform_1, window_bounds = array<i64: 32, 128>}, {pipeline_mode = #tpu.pipeline_mode<synchronous>, transform_indices = @transform_2, window_bounds = array<i64: 32, 128>}, {pipeline_mode = #tpu.pipeline_mode<synchronous>, transform_indices = @transform_3, window_bounds = array<i64: 1, 128>}, {transform_indices = @transform_4, window_bounds = array<i64: 1, 8, 32>}, {transform_indices = @transform_5, window_bounds = array<i64: 1, 8, 32>}, {transform_indices = @transform_6, window_bounds = array<i64: 8, 8, 128>}, {transform_indices = @transform_7, window_bounds = array<i64: 1, 8, 32>}, {transform_indices = @transform_8, window_bounds = array<i64: 1, 8, 32>}]} {
    %c0_i32 = arith.constant 0 : i32
    %0 = arith.cmpi eq, %arg1, %c0_i32 : i32
    %1 = arith.extui %0 : i1 to i32
    %c0_i32_0 = arith.constant 0 : i32
    %2 = arith.cmpi ne, %1, %c0_i32_0 : i32
    scf.if %2 {
      %c0_72 = arith.constant 0 : index
      %c0_73 = arith.constant 0 : index
      %c0_74 = arith.constant 0 : index
      %223 = vector.load %arg6[%c0_72, %c0_73, %c0_74] : memref<1x8x32xf32, #tpu.memory_space<vmem>>, vector<1x8x32xf32>
      %c0_75 = arith.constant 0 : index
      %c0_76 = arith.constant 0 : index
      %c0_77 = arith.constant 0 : index
      %224 = vector.load %arg9[%c0_75, %c0_76, %c0_77] : memref<1x8x32xf32, #tpu.memory_space<vmem>>, vector<1x8x32xf32>
      tpu.vector_store %arg9[%c0_75, %c0_76, %c0_77], %223 {strides = array<i32>} : memref<1x8x32xf32, #tpu.memory_space<vmem>>, vector<1x8x32xf32>,
      %c0_78 = arith.constant 0 : index
      %c0_79 = arith.constant 0 : index
      %c0_80 = arith.constant 0 : index
      %225 = vector.load %arg7[%c0_78, %c0_79, %c0_80] : memref<1x8x32xf32, #tpu.memory_space<vmem>>, vector<1x8x32xf32>
      %c0_81 = arith.constant 0 : index
      %c0_82 = arith.constant 0 : index
      %c0_83 = arith.constant 0 : index
      %226 = vector.load %arg10[%c0_81, %c0_82, %c0_83] : memref<1x8x32xf32, #tpu.memory_space<vmem>>, vector<1x8x32xf32>
      tpu.vector_store %arg10[%c0_81, %c0_82, %c0_83], %225 {strides = array<i32>} : memref<1x8x32xf32, #tpu.memory_space<vmem>>, vector<1x8x32xf32>,
    } else {
    }
    %c0 = arith.constant 0 : index
    %c0_1 = arith.constant 0 : index
    %3 = vector.load %arg3[%c0, %c0_1] : memref<32x128xbf16, #tpu.memory_space<vmem>>, vector<32x128xbf16>
    %c0_2 = arith.constant 0 : index
    %c0_3 = arith.constant 0 : index
    %c0_4 = arith.constant 0 : index
    %4 = vector.load %arg9[%c0_2, %c0_3, %c0_4] : memref<1x8x32xf32, #tpu.memory_space<vmem>>, vector<1x8x32xf32>
    %5 = vector.shape_cast %4 : vector<1x8x32xf32> to vector<8x32xf32>
    %c0_5 = arith.constant 0 : index
    %c0_6 = arith.constant 0 : index
    %c0_7 = arith.constant 0 : index
    %6 = vector.load %arg10[%c0_5, %c0_6, %c0_7] : memref<1x8x32xf32, #tpu.memory_space<vmem>>, vector<1x8x32xf32>
    %7 = vector.shape_cast %6 : vector<1x8x32xf32> to vector<8x32xf32>
    %c0_i32_8 = arith.constant 0 : i32
    %8 = arith.index_cast %c0_i32_8 : i32 to index
    %c0_9 = arith.constant 0 : index
    %c0_10 = arith.constant 0 : index
    %9 = vector.load %arg2[%8, %c0_9, %c0_10] : memref<8x8x128xf32, #tpu.memory_space<vmem>>, vector<1x8x128xf32>
    %10 = vector.shape_cast %9 : vector<1x8x128xf32> to vector<8x128xf32>
    %11 = arith.truncf %5 : vector<8x32xf32> to vector<8x32xbf16>
    %cst = arith.constant dense<0.000000e+00> : vector<8x128xf32>
    %12 = tpu.matmul %11, %3, %cst {dimension_numbers = #tpu.dot_dimension_numbers<[1], [0], [0], [1], [0, 0, 1, 1], [], []>} : vector<8x32xbf16>, vector<32x128xbf16>, vector<8x128xf32> -> vector<8x128xf32>
    %13 = arith.addf %10, %12 : vector<8x128xf32>
    %14 = arith.negf %13 : vector<8x128xf32>
    %15 = math.exp %14 : vector<8x128xf32>
    %cst_11 = arith.constant 1.000000e+00 : f32
    %16 = vector.broadcast %cst_11 : f32 to vector<8x128xf32>
    %17 = arith.addf %16, %15 : vector<8x128xf32>
    %18 = arith.divf %16, %17 : vector<8x128xf32>
    %19 = vector.extract_strided_slice %18 {offsets = [0, 0], sizes = [8, 32], strides = [1, 1]} : vector<8x128xf32> to vector<8x32xf32>
    %20 = vector.extract_strided_slice %18 {offsets = [0, 32], sizes = [8, 32], strides = [1, 1]} : vector<8x128xf32> to vector<8x32xf32>
    %21 = vector.extract_strided_slice %18 {offsets = [0, 96], sizes = [8, 32], strides = [1, 1]} : vector<8x128xf32> to vector<8x32xf32>
    %22 = vector.extract_strided_slice %13 {offsets = [0, 64], sizes = [8, 32], strides = [1, 1]} : vector<8x128xf32> to vector<8x32xf32>
    %23 = math.tanh %22 : vector<8x32xf32>
    %24 = arith.mulf %20, %7 : vector<8x32xf32>
    %25 = arith.mulf %19, %23 : vector<8x32xf32>
    %26 = arith.addf %24, %25 : vector<8x32xf32>
    %27 = math.tanh %26 : vector<8x32xf32>
    %28 = arith.mulf %21, %27 : vector<8x32xf32>
    %c8_i32 = arith.constant 8 : i32
    %29 = arith.muli %c0_i32_8, %c8_i32 : i32
    %30 = tpu.assume_multiple %29, 8 : i32
    %31 = arith.index_cast %30 : i32 to index
    %c0_12 = arith.constant 0 : index
    %32 = vector.load %arg11[%31, %c0_12] : memref<64x32xf32, #tpu.memory_space<vmem>>, vector<8x32xf32>
    tpu.vector_store %arg11[%31, %c0_12], %28 {strides = array<i32>} : memref<64x32xf32, #tpu.memory_space<vmem>>, vector<8x32xf32>,
    %c1_i32 = arith.constant 1 : i32
    %33 = arith.index_cast %c1_i32 : i32 to index
    %c0_13 = arith.constant 0 : index
    %c0_14 = arith.constant 0 : index
    %34 = vector.load %arg2[%33, %c0_13, %c0_14] : memref<8x8x128xf32, #tpu.memory_space<vmem>>, vector<1x8x128xf32>
    %35 = vector.shape_cast %34 : vector<1x8x128xf32> to vector<8x128xf32>
    %36 = arith.truncf %28 : vector<8x32xf32> to vector<8x32xbf16>
    %cst_15 = arith.constant dense<0.000000e+00> : vector<8x128xf32>
    %37 = tpu.matmul %36, %3, %cst_15 {dimension_numbers = #tpu.dot_dimension_numbers<[1], [0], [0], [1], [0, 0, 1, 1], [], []>} : vector<8x32xbf16>, vector<32x128xbf16>, vector<8x128xf32> -> vector<8x128xf32>
    %38 = arith.addf %35, %37 : vector<8x128xf32>
    %39 = arith.negf %38 : vector<8x128xf32>
    %40 = math.exp %39 : vector<8x128xf32>
    %cst_16 = arith.constant 1.000000e+00 : f32
    %41 = vector.broadcast %cst_16 : f32 to vector<8x128xf32>
    %42 = arith.addf %41, %40 : vector<8x128xf32>
    %43 = arith.divf %41, %42 : vector<8x128xf32>
    %44 = vector.extract_strided_slice %43 {offsets = [0, 0], sizes = [8, 32], strides = [1, 1]} : vector<8x128xf32> to vector<8x32xf32>
    %45 = vector.extract_strided_slice %43 {offsets = [0, 32], sizes = [8, 32], strides = [1, 1]} : vector<8x128xf32> to vector<8x32xf32>
    %46 = vector.extract_strided_slice %43 {offsets = [0, 96], sizes = [8, 32], strides = [1, 1]} : vector<8x128xf32> to vector<8x32xf32>
    %47 = vector.extract_strided_slice %38 {offsets = [0, 64], sizes = [8, 32], strides = [1, 1]} : vector<8x128xf32> to vector<8x32xf32>
    %48 = math.tanh %47 : vector<8x32xf32>
    %49 = arith.mulf %45, %26 : vector<8x32xf32>
    %50 = arith.mulf %44, %48 : vector<8x32xf32>
    %51 = arith.addf %49, %50 : vector<8x32xf32>
    %52 = math.tanh %51 : vector<8x32xf32>
    %53 = arith.mulf %46, %52 : vector<8x32xf32>
    %c8_i32_17 = arith.constant 8 : i32
    %54 = arith.muli %c1_i32, %c8_i32_17 : i32
    %55 = tpu.assume_multiple %54, 8 : i32
    %56 = arith.index_cast %55 : i32 to index
    %c0_18 = arith.constant 0 : index
    %57 = vector.load %arg11[%56, %c0_18] : memref<64x32xf32, #tpu.memory_space<vmem>>, vector<8x32xf32>
    tpu.vector_store %arg11[%56, %c0_18], %53 {strides = array<i32>} : memref<64x32xf32, #tpu.memory_space<vmem>>, vector<8x32xf32>,
    %c2_i32 = arith.constant 2 : i32
    %58 = arith.index_cast %c2_i32 : i32 to index
    %c0_19 = arith.constant 0 : index
    %c0_20 = arith.constant 0 : index
    %59 = vector.load %arg2[%58, %c0_19, %c0_20] : memref<8x8x128xf32, #tpu.memory_space<vmem>>, vector<1x8x128xf32>
    %60 = vector.shape_cast %59 : vector<1x8x128xf32> to vector<8x128xf32>
    %61 = arith.truncf %53 : vector<8x32xf32> to vector<8x32xbf16>
    %cst_21 = arith.constant dense<0.000000e+00> : vector<8x128xf32>
    %62 = tpu.matmul %61, %3, %cst_21 {dimension_numbers = #tpu.dot_dimension_numbers<[1], [0], [0], [1], [0, 0, 1, 1], [], []>} : vector<8x32xbf16>, vector<32x128xbf16>, vector<8x128xf32> -> vector<8x128xf32>
    %63 = arith.addf %60, %62 : vector<8x128xf32>
    %64 = arith.negf %63 : vector<8x128xf32>
    %65 = math.exp %64 : vector<8x128xf32>
    %cst_22 = arith.constant 1.000000e+00 : f32
    %66 = vector.broadcast %cst_22 : f32 to vector<8x128xf32>
    %67 = arith.addf %66, %65 : vector<8x128xf32>
    %68 = arith.divf %66, %67 : vector<8x128xf32>
    %69 = vector.extract_strided_slice %68 {offsets = [0, 0], sizes = [8, 32], strides = [1, 1]} : vector<8x128xf32> to vector<8x32xf32>
    %70 = vector.extract_strided_slice %68 {offsets = [0, 32], sizes = [8, 32], strides = [1, 1]} : vector<8x128xf32> to vector<8x32xf32>
    %71 = vector.extract_strided_slice %68 {offsets = [0, 96], sizes = [8, 32], strides = [1, 1]} : vector<8x128xf32> to vector<8x32xf32>
    %72 = vector.extract_strided_slice %63 {offsets = [0, 64], sizes = [8, 32], strides = [1, 1]} : vector<8x128xf32> to vector<8x32xf32>
    %73 = math.tanh %72 : vector<8x32xf32>
    %74 = arith.mulf %70, %51 : vector<8x32xf32>
    %75 = arith.mulf %69, %73 : vector<8x32xf32>
    %76 = arith.addf %74, %75 : vector<8x32xf32>
    %77 = math.tanh %76 : vector<8x32xf32>
    %78 = arith.mulf %71, %77 : vector<8x32xf32>
    %c8_i32_23 = arith.constant 8 : i32
    %79 = arith.muli %c2_i32, %c8_i32_23 : i32
    %80 = tpu.assume_multiple %79, 8 : i32
    %81 = arith.index_cast %80 : i32 to index
    %c0_24 = arith.constant 0 : index
    %82 = vector.load %arg11[%81, %c0_24] : memref<64x32xf32, #tpu.memory_space<vmem>>, vector<8x32xf32>
    tpu.vector_store %arg11[%81, %c0_24], %78 {strides = array<i32>} : memref<64x32xf32, #tpu.memory_space<vmem>>, vector<8x32xf32>,
    %c3_i32 = arith.constant 3 : i32
    %83 = arith.index_cast %c3_i32 : i32 to index
    %c0_25 = arith.constant 0 : index
    %c0_26 = arith.constant 0 : index
    %84 = vector.load %arg2[%83, %c0_25, %c0_26] : memref<8x8x128xf32, #tpu.memory_space<vmem>>, vector<1x8x128xf32>
    %85 = vector.shape_cast %84 : vector<1x8x128xf32> to vector<8x128xf32>
    %86 = arith.truncf %78 : vector<8x32xf32> to vector<8x32xbf16>
    %cst_27 = arith.constant dense<0.000000e+00> : vector<8x128xf32>
    %87 = tpu.matmul %86, %3, %cst_27 {dimension_numbers = #tpu.dot_dimension_numbers<[1], [0], [0], [1], [0, 0, 1, 1], [], []>} : vector<8x32xbf16>, vector<32x128xbf16>, vector<8x128xf32> -> vector<8x128xf32>
    %88 = arith.addf %85, %87 : vector<8x128xf32>
    %89 = arith.negf %88 : vector<8x128xf32>
    %90 = math.exp %89 : vector<8x128xf32>
    %cst_28 = arith.constant 1.000000e+00 : f32
    %91 = vector.broadcast %cst_28 : f32 to vector<8x128xf32>
    %92 = arith.addf %91, %90 : vector<8x128xf32>
    %93 = arith.divf %91, %92 : vector<8x128xf32>
    %94 = vector.extract_strided_slice %93 {offsets = [0, 0], sizes = [8, 32], strides = [1, 1]} : vector<8x128xf32> to vector<8x32xf32>
    %95 = vector.extract_strided_slice %93 {offsets = [0, 32], sizes = [8, 32], strides = [1, 1]} : vector<8x128xf32> to vector<8x32xf32>
    %96 = vector.extract_strided_slice %93 {offsets = [0, 96], sizes = [8, 32], strides = [1, 1]} : vector<8x128xf32> to vector<8x32xf32>
    %97 = vector.extract_strided_slice %88 {offsets = [0, 64], sizes = [8, 32], strides = [1, 1]} : vector<8x128xf32> to vector<8x32xf32>
    %98 = math.tanh %97 : vector<8x32xf32>
    %99 = arith.mulf %95, %76 : vector<8x32xf32>
    %100 = arith.mulf %94, %98 : vector<8x32xf32>
    %101 = arith.addf %99, %100 : vector<8x32xf32>
    %102 = math.tanh %101 : vector<8x32xf32>
    %103 = arith.mulf %96, %102 : vector<8x32xf32>
    %c8_i32_29 = arith.constant 8 : i32
    %104 = arith.muli %c3_i32, %c8_i32_29 : i32
    %105 = tpu.assume_multiple %104, 8 : i32
    %106 = arith.index_cast %105 : i32 to index
    %c0_30 = arith.constant 0 : index
    %107 = vector.load %arg11[%106, %c0_30] : memref<64x32xf32, #tpu.memory_space<vmem>>, vector<8x32xf32>
    tpu.vector_store %arg11[%106, %c0_30], %103 {strides = array<i32>} : memref<64x32xf32, #tpu.memory_space<vmem>>, vector<8x32xf32>,
    %c4_i32 = arith.constant 4 : i32
    %108 = arith.index_cast %c4_i32 : i32 to index
    %c0_31 = arith.constant 0 : index
    %c0_32 = arith.constant 0 : index
    %109 = vector.load %arg2[%108, %c0_31, %c0_32] : memref<8x8x128xf32, #tpu.memory_space<vmem>>, vector<1x8x128xf32>
    %110 = vector.shape_cast %109 : vector<1x8x128xf32> to vector<8x128xf32>
    %111 = arith.truncf %103 : vector<8x32xf32> to vector<8x32xbf16>
    %cst_33 = arith.constant dense<0.000000e+00> : vector<8x128xf32>
    %112 = tpu.matmul %111, %3, %cst_33 {dimension_numbers = #tpu.dot_dimension_numbers<[1], [0], [0], [1], [0, 0, 1, 1], [], []>} : vector<8x32xbf16>, vector<32x128xbf16>, vector<8x128xf32> -> vector<8x128xf32>
    %113 = arith.addf %110, %112 : vector<8x128xf32>
    %114 = arith.negf %113 : vector<8x128xf32>
    %115 = math.exp %114 : vector<8x128xf32>
    %cst_34 = arith.constant 1.000000e+00 : f32
    %116 = vector.broadcast %cst_34 : f32 to vector<8x128xf32>
    %117 = arith.addf %116, %115 : vector<8x128xf32>
    %118 = arith.divf %116, %117 : vector<8x128xf32>
    %119 = vector.extract_strided_slice %118 {offsets = [0, 0], sizes = [8, 32], strides = [1, 1]} : vector<8x128xf32> to vector<8x32xf32>
    %120 = vector.extract_strided_slice %118 {offsets = [0, 32], sizes = [8, 32], strides = [1, 1]} : vector<8x128xf32> to vector<8x32xf32>
    %121 = vector.extract_strided_slice %118 {offsets = [0, 96], sizes = [8, 32], strides = [1, 1]} : vector<8x128xf32> to vector<8x32xf32>
    %122 = vector.extract_strided_slice %113 {offsets = [0, 64], sizes = [8, 32], strides = [1, 1]} : vector<8x128xf32> to vector<8x32xf32>
    %123 = math.tanh %122 : vector<8x32xf32>
    %124 = arith.mulf %120, %101 : vector<8x32xf32>
    %125 = arith.mulf %119, %123 : vector<8x32xf32>
    %126 = arith.addf %124, %125 : vector<8x32xf32>
    %127 = math.tanh %126 : vector<8x32xf32>
    %128 = arith.mulf %121, %127 : vector<8x32xf32>
    %c8_i32_35 = arith.constant 8 : i32
    %129 = arith.muli %c4_i32, %c8_i32_35 : i32
    %130 = tpu.assume_multiple %129, 8 : i32
    %131 = arith.index_cast %130 : i32 to index
    %c0_36 = arith.constant 0 : index
    %132 = vector.load %arg11[%131, %c0_36] : memref<64x32xf32, #tpu.memory_space<vmem>>, vector<8x32xf32>
    tpu.vector_store %arg11[%131, %c0_36], %128 {strides = array<i32>} : memref<64x32xf32, #tpu.memory_space<vmem>>, vector<8x32xf32>,
    %c5_i32 = arith.constant 5 : i32
    %133 = arith.index_cast %c5_i32 : i32 to index
    %c0_37 = arith.constant 0 : index
    %c0_38 = arith.constant 0 : index
    %134 = vector.load %arg2[%133, %c0_37, %c0_38] : memref<8x8x128xf32, #tpu.memory_space<vmem>>, vector<1x8x128xf32>
    %135 = vector.shape_cast %134 : vector<1x8x128xf32> to vector<8x128xf32>
    %136 = arith.truncf %128 : vector<8x32xf32> to vector<8x32xbf16>
    %cst_39 = arith.constant dense<0.000000e+00> : vector<8x128xf32>
    %137 = tpu.matmul %136, %3, %cst_39 {dimension_numbers = #tpu.dot_dimension_numbers<[1], [0], [0], [1], [0, 0, 1, 1], [], []>} : vector<8x32xbf16>, vector<32x128xbf16>, vector<8x128xf32> -> vector<8x128xf32>
    %138 = arith.addf %135, %137 : vector<8x128xf32>
    %139 = arith.negf %138 : vector<8x128xf32>
    %140 = math.exp %139 : vector<8x128xf32>
    %cst_40 = arith.constant 1.000000e+00 : f32
    %141 = vector.broadcast %cst_40 : f32 to vector<8x128xf32>
    %142 = arith.addf %141, %140 : vector<8x128xf32>
    %143 = arith.divf %141, %142 : vector<8x128xf32>
    %144 = vector.extract_strided_slice %143 {offsets = [0, 0], sizes = [8, 32], strides = [1, 1]} : vector<8x128xf32> to vector<8x32xf32>
    %145 = vector.extract_strided_slice %143 {offsets = [0, 32], sizes = [8, 32], strides = [1, 1]} : vector<8x128xf32> to vector<8x32xf32>
    %146 = vector.extract_strided_slice %143 {offsets = [0, 96], sizes = [8, 32], strides = [1, 1]} : vector<8x128xf32> to vector<8x32xf32>
    %147 = vector.extract_strided_slice %138 {offsets = [0, 64], sizes = [8, 32], strides = [1, 1]} : vector<8x128xf32> to vector<8x32xf32>
    %148 = math.tanh %147 : vector<8x32xf32>
    %149 = arith.mulf %145, %126 : vector<8x32xf32>
    %150 = arith.mulf %144, %148 : vector<8x32xf32>
    %151 = arith.addf %149, %150 : vector<8x32xf32>
    %152 = math.tanh %151 : vector<8x32xf32>
    %153 = arith.mulf %146, %152 : vector<8x32xf32>
    %c8_i32_41 = arith.constant 8 : i32
    %154 = arith.muli %c5_i32, %c8_i32_41 : i32
    %155 = tpu.assume_multiple %154, 8 : i32
    %156 = arith.index_cast %155 : i32 to index
    %c0_42 = arith.constant 0 : index
    %157 = vector.load %arg11[%156, %c0_42] : memref<64x32xf32, #tpu.memory_space<vmem>>, vector<8x32xf32>
    tpu.vector_store %arg11[%156, %c0_42], %153 {strides = array<i32>} : memref<64x32xf32, #tpu.memory_space<vmem>>, vector<8x32xf32>,
    %c6_i32 = arith.constant 6 : i32
    %158 = arith.index_cast %c6_i32 : i32 to index
    %c0_43 = arith.constant 0 : index
    %c0_44 = arith.constant 0 : index
    %159 = vector.load %arg2[%158, %c0_43, %c0_44] : memref<8x8x128xf32, #tpu.memory_space<vmem>>, vector<1x8x128xf32>
    %160 = vector.shape_cast %159 : vector<1x8x128xf32> to vector<8x128xf32>
    %161 = arith.truncf %153 : vector<8x32xf32> to vector<8x32xbf16>
    %cst_45 = arith.constant dense<0.000000e+00> : vector<8x128xf32>
    %162 = tpu.matmul %161, %3, %cst_45 {dimension_numbers = #tpu.dot_dimension_numbers<[1], [0], [0], [1], [0, 0, 1, 1], [], []>} : vector<8x32xbf16>, vector<32x128xbf16>, vector<8x128xf32> -> vector<8x128xf32>
    %163 = arith.addf %160, %162 : vector<8x128xf32>
    %164 = arith.negf %163 : vector<8x128xf32>
    %165 = math.exp %164 : vector<8x128xf32>
    %cst_46 = arith.constant 1.000000e+00 : f32
    %166 = vector.broadcast %cst_46 : f32 to vector<8x128xf32>
    %167 = arith.addf %166, %165 : vector<8x128xf32>
    %168 = arith.divf %166, %167 : vector<8x128xf32>
    %169 = vector.extract_strided_slice %168 {offsets = [0, 0], sizes = [8, 32], strides = [1, 1]} : vector<8x128xf32> to vector<8x32xf32>
    %170 = vector.extract_strided_slice %168 {offsets = [0, 32], sizes = [8, 32], strides = [1, 1]} : vector<8x128xf32> to vector<8x32xf32>
    %171 = vector.extract_strided_slice %168 {offsets = [0, 96], sizes = [8, 32], strides = [1, 1]} : vector<8x128xf32> to vector<8x32xf32>
    %172 = vector.extract_strided_slice %163 {offsets = [0, 64], sizes = [8, 32], strides = [1, 1]} : vector<8x128xf32> to vector<8x32xf32>
    %173 = math.tanh %172 : vector<8x32xf32>
    %174 = arith.mulf %170, %151 : vector<8x32xf32>
    %175 = arith.mulf %169, %173 : vector<8x32xf32>
    %176 = arith.addf %174, %175 : vector<8x32xf32>
    %177 = math.tanh %176 : vector<8x32xf32>
    %178 = arith.mulf %171, %177 : vector<8x32xf32>
    %c8_i32_47 = arith.constant 8 : i32
    %179 = arith.muli %c6_i32, %c8_i32_47 : i32
    %180 = tpu.assume_multiple %179, 8 : i32
    %181 = arith.index_cast %180 : i32 to index
    %c0_48 = arith.constant 0 : index
    %182 = vector.load %arg11[%181, %c0_48] : memref<64x32xf32, #tpu.memory_space<vmem>>, vector<8x32xf32>
    tpu.vector_store %arg11[%181, %c0_48], %178 {strides = array<i32>} : memref<64x32xf32, #tpu.memory_space<vmem>>, vector<8x32xf32>,
    %c7_i32 = arith.constant 7 : i32
    %183 = arith.index_cast %c7_i32 : i32 to index
    %c0_49 = arith.constant 0 : index
    %c0_50 = arith.constant 0 : index
    %184 = vector.load %arg2[%183, %c0_49, %c0_50] : memref<8x8x128xf32, #tpu.memory_space<vmem>>, vector<1x8x128xf32>
    %185 = vector.shape_cast %184 : vector<1x8x128xf32> to vector<8x128xf32>
    %186 = arith.truncf %178 : vector<8x32xf32> to vector<8x32xbf16>
    %cst_51 = arith.constant dense<0.000000e+00> : vector<8x128xf32>
    %187 = tpu.matmul %186, %3, %cst_51 {dimension_numbers = #tpu.dot_dimension_numbers<[1], [0], [0], [1], [0, 0, 1, 1], [], []>} : vector<8x32xbf16>, vector<32x128xbf16>, vector<8x128xf32> -> vector<8x128xf32>
    %188 = arith.addf %185, %187 : vector<8x128xf32>
    %189 = arith.negf %188 : vector<8x128xf32>
    %190 = math.exp %189 : vector<8x128xf32>
    %cst_52 = arith.constant 1.000000e+00 : f32
    %191 = vector.broadcast %cst_52 : f32 to vector<8x128xf32>
    %192 = arith.addf %191, %190 : vector<8x128xf32>
    %193 = arith.divf %191, %192 : vector<8x128xf32>
    %194 = vector.extract_strided_slice %193 {offsets = [0, 0], sizes = [8, 32], strides = [1, 1]} : vector<8x128xf32> to vector<8x32xf32>
    %195 = vector.extract_strided_slice %193 {offsets = [0, 32], sizes = [8, 32], strides = [1, 1]} : vector<8x128xf32> to vector<8x32xf32>
    %196 = vector.extract_strided_slice %193 {offsets = [0, 96], sizes = [8, 32], strides = [1, 1]} : vector<8x128xf32> to vector<8x32xf32>
    %197 = vector.extract_strided_slice %188 {offsets = [0, 64], sizes = [8, 32], strides = [1, 1]} : vector<8x128xf32> to vector<8x32xf32>
    %198 = math.tanh %197 : vector<8x32xf32>
    %199 = arith.mulf %195, %176 : vector<8x32xf32>
    %200 = arith.mulf %194, %198 : vector<8x32xf32>
    %201 = arith.addf %199, %200 : vector<8x32xf32>
    %202 = math.tanh %201 : vector<8x32xf32>
    %203 = arith.mulf %196, %202 : vector<8x32xf32>
    %c8_i32_53 = arith.constant 8 : i32
    %204 = arith.muli %c7_i32, %c8_i32_53 : i32
    %205 = tpu.assume_multiple %204, 8 : i32
    %206 = arith.index_cast %205 : i32 to index
    %c0_54 = arith.constant 0 : index
    %207 = vector.load %arg11[%206, %c0_54] : memref<64x32xf32, #tpu.memory_space<vmem>>, vector<8x32xf32>
    tpu.vector_store %arg11[%206, %c0_54], %203 {strides = array<i32>} : memref<64x32xf32, #tpu.memory_space<vmem>>, vector<8x32xf32>,
    %c8_i32_55 = arith.constant 8 : i32
    %c0_56 = arith.constant 0 : index
    %c0_57 = arith.constant 0 : index
    %c0_58 = arith.constant 0 : index
    %208 = vector.load %arg9[%c0_56, %c0_57, %c0_58] : memref<1x8x32xf32, #tpu.memory_space<vmem>>, vector<1x8x32xf32>
    %209 = vector.shape_cast %208 : vector<1x8x32xf32> to vector<8x32xf32>
    %210 = vector.shape_cast %203 : vector<8x32xf32> to vector<1x8x32xf32>
    tpu.vector_store %arg9[%c0_56, %c0_57, %c0_58], %210 {strides = array<i32>} : memref<1x8x32xf32, #tpu.memory_space<vmem>>, vector<1x8x32xf32>,
    %c0_59 = arith.constant 0 : index
    %c0_60 = arith.constant 0 : index
    %c0_61 = arith.constant 0 : index
    %211 = vector.load %arg10[%c0_59, %c0_60, %c0_61] : memref<1x8x32xf32, #tpu.memory_space<vmem>>, vector<1x8x32xf32>
    %212 = vector.shape_cast %211 : vector<1x8x32xf32> to vector<8x32xf32>
    %213 = vector.shape_cast %201 : vector<8x32xf32> to vector<1x8x32xf32>
    tpu.vector_store %arg10[%c0_59, %c0_60, %c0_61], %213 {strides = array<i32>} : memref<1x8x32xf32, #tpu.memory_space<vmem>>, vector<1x8x32xf32>,
    %c0_62 = arith.constant 0 : index
    %c0_63 = arith.constant 0 : index
    %214 = vector.load %arg11[%c0_62, %c0_63] : memref<64x32xf32, #tpu.memory_space<vmem>>, vector<64x32xf32>
    %215 = arith.truncf %214 : vector<64x32xf32> to vector<64x32xbf16>
    %c0_64 = arith.constant 0 : index
    %c0_65 = arith.constant 0 : index
    %216 = vector.load %arg4[%c0_64, %c0_65] : memref<32x128xbf16, #tpu.memory_space<vmem>>, vector<32x128xbf16>
    %cst_66 = arith.constant dense<0.000000e+00> : vector<64x128xf32>
    %217 = tpu.matmul %215, %216, %cst_66 {dimension_numbers = #tpu.dot_dimension_numbers<[1], [0], [0], [1], [0, 0, 1, 1], [], []>} : vector<64x32xbf16>, vector<32x128xbf16>, vector<64x128xf32> -> vector<64x128xf32>
    %c0_67 = arith.constant 0 : index
    %c0_68 = arith.constant 0 : index
    %218 = vector.load %arg5[%c0_67, %c0_68] : memref<1x128xf32, #tpu.memory_space<vmem>>, vector<1x128xf32>
    %219 = vector.broadcast %218 : vector<1x128xf32> to vector<64x128xf32>
    %220 = arith.addf %217, %219 : vector<64x128xf32>
    %221 = vector.shape_cast %220 : vector<64x128xf32> to vector<8x8x128xf32>
    %c0_69 = arith.constant 0 : index
    %c0_70 = arith.constant 0 : index
    %c0_71 = arith.constant 0 : index
    %222 = vector.load %arg8[%c0_69, %c0_70, %c0_71] : memref<8x8x128xf32, #tpu.memory_space<vmem>>, vector<8x8x128xf32>
    tpu.vector_store %arg8[%c0_69, %c0_70, %c0_71], %221 {strides = array<i32>} : memref<8x8x128xf32, #tpu.memory_space<vmem>>, vector<8x8x128xf32>,
    return
  }
  func.func @transform_0(%arg0: i32, %arg1: i32) -> (i32, i32, i32) {
    %c0_i32 = arith.constant 0 : i32
    %c0_i32_0 = arith.constant 0 : i32
    return %arg1, %arg0, %c0_i32 : i32, i32, i32
  }
  func.func @transform_1(%arg0: i32, %arg1: i32) -> (i32, i32) {
    %c0_i32 = arith.constant 0 : i32
    %c0_i32_0 = arith.constant 0 : i32
    %c0_i32_1 = arith.constant 0 : i32
    return %c0_i32, %c0_i32_0 : i32, i32
  }
  func.func @transform_2(%arg0: i32, %arg1: i32) -> (i32, i32) {
    %c0_i32 = arith.constant 0 : i32
    %c0_i32_0 = arith.constant 0 : i32
    %c0_i32_1 = arith.constant 0 : i32
    return %c0_i32, %c0_i32_0 : i32, i32
  }
  func.func @transform_3(%arg0: i32, %arg1: i32) -> (i32, i32) {
    %c0_i32 = arith.constant 0 : i32
    %c0_i32_0 = arith.constant 0 : i32
    %c0_i32_1 = arith.constant 0 : i32
    return %c0_i32, %c0_i32_0 : i32, i32
  }
  func.func @transform_4(%arg0: i32, %arg1: i32) -> (i32, i32, i32) {
    %c0_i32 = arith.constant 0 : i32
    %c0_i32_0 = arith.constant 0 : i32
    %c0_i32_1 = arith.constant 0 : i32
    return %c0_i32, %arg0, %c0_i32_0 : i32, i32, i32
  }
  func.func @transform_5(%arg0: i32, %arg1: i32) -> (i32, i32, i32) {
    %c0_i32 = arith.constant 0 : i32
    %c0_i32_0 = arith.constant 0 : i32
    %c0_i32_1 = arith.constant 0 : i32
    return %c0_i32, %arg0, %c0_i32_0 : i32, i32, i32
  }
  func.func @transform_6(%arg0: i32, %arg1: i32) -> (i32, i32, i32) {
    %c0_i32 = arith.constant 0 : i32
    %c0_i32_0 = arith.constant 0 : i32
    return %arg1, %arg0, %c0_i32 : i32, i32, i32
  }
  func.func @transform_7(%arg0: i32, %arg1: i32) -> (i32, i32, i32) {
    %c0_i32 = arith.constant 0 : i32
    %c0_i32_0 = arith.constant 0 : i32
    %c0_i32_1 = arith.constant 0 : i32
    return %c0_i32, %arg0, %c0_i32_0 : i32, i32, i32
  }
  func.func @transform_8(%arg0: i32, %arg1: i32) -> (i32, i32, i32) {
    %c0_i32 = arith.constant 0 : i32
    %c0_i32_0 = arith.constant 0 : i32
    %c0_i32_1 = arith.constant 0 : i32
    return %c0_i32, %arg0, %c0_i32_0 : i32, i32, i32
  }
}

</mosaic_0001>

<llo_original>
// kernel: tpu_custom_call.1
$region0: #{tpu_custom_call.1}
  #allocation0 [shape = 'u32[]', space=smem, size = 0x4, offset = 0x4, fixed_abs, tag = 'smem constant byte address 0x4 - core index']
  #allocation1 [shape = 'u32[144,128]{1,0:T(1,128)}', space=vmem, size = 0x12000, scoped, tag = 'internal scratch']
  #allocation2 [shape = 'f32[64,32]{1,0:T(8,128)}', space=vmem, size = 0x8000, scoped, tag = 'scratch operand']
  %s0 = inlined_call_operand.hbm [shape: f32[8,8,128], index: 0, kind: input, shape index: {}]
  %s1 = inlined_call_operand.hbm [shape: bf16[32,128], index: 1, kind: input, shape index: {}]
  %s2 = inlined_call_operand.hbm [shape: bf16[32,128], index: 2, kind: input, shape index: {}]
  %s3 = inlined_call_operand.vmem [shape: f32[1,128], index: 3, kind: input, shape index: {}]
  %s4 = inlined_call_operand.vmem [shape: f32[1,8,32], index: 4, kind: input, shape index: {}]
  %s5 = inlined_call_operand.vmem [shape: f32[1,8,32], index: 5, kind: input, shape index: {}]
  %s6 = inlined_call_operand.hbm [shape: f32[8,8,128], index: 6, kind: output, shape index: {0}]
  %s7 = inlined_call_operand.hbm [shape: f32[1,8,32], index: 7, kind: output, shape index: {1}]
  %s8 = inlined_call_operand.hbm [shape: f32[1,8,32], index: 8, kind: output, shape index: {2}]
  %9 = xla_tuple %s6, %s7, %s8
  %s10 = sld [smem:[#allocation0]]
  $region66: #{tpu_custom_call.1} parent=0
    _
  %s12 = ssub.s32 1, %s10
  %s13 = scalar_select 0, %s12, %s10
  $region1: #{tpu_custom_call.1} parent=0
    #allocation3 [shape = 'u8[32768]{0}', space=vmem, size = 0x8000, scoped, tag = 'input window, operand 0, single buffered']
    #allocation4 [shape = 's32[1]{0}', space=sflag, size = 0x4, scoped, tag = 'scoped memory for tpu_custom_call.1']
    #allocation5 [shape = 's32[1]{0}', space=sflag, size = 0x4, scoped, tag = 'scoped memory for tpu_custom_call.1']
    #allocation6 [shape = 'u8[8192]{0}', space=vmem, size = 0x2000, scoped, tag = 'input window, operand 1, single buffered']
    #allocation7 [shape = 's32[1]{0}', space=sflag, size = 0x4, scoped, tag = 'scoped memory for tpu_custom_call.1']
    #allocation8 [shape = 'u8[8192]{0}', space=vmem, size = 0x2000, scoped, tag = 'input window, operand 2, single buffered']
    #allocation9 [shape = 'u8[32768]{0}', space=vmem, size = 0x8000, scoped, tag = 'output window, operand 0, single buffered']
    #allocation10 [shape = 'u8[4096]{0}', space=vmem, size = 0x1000, scoped, tag = 'output window, operand 1, single buffered']
    #allocation11 [shape = 's32[1]{0}', space=sflag, size = 0x4, scoped, tag = 'scoped memory for tpu_custom_call.1']
    #allocation12 [shape = 'u8[4096]{0}', space=vmem, size = 0x1000, scoped, tag = 'output window, operand 2, single buffered']
    %14 = vsyncpa [#allocation4], 0
    %15 = vsyncpa [#allocation7], 0
    %16 = vsyncpa [#allocation5], 0
    %17 = vsyncpa [#allocation11], 0
    // Predicated region
    $region2: #{tpu_custom_call.1} parent=1 // pred_check
      _
    $region3: #{tpu_custom_call.1} parent=1 // pred_check_branch
      %19 = sbr.rel (0) target = $region5
    $region4: #{tpu_custom_call.1} parent=1 // pred_region
      %s21 = ssub.s32 1024, 1024
      %22 = vsyncadd [#allocation4], %s21
      %s23 = sshll.u32 [#allocation3], 4
      %s24 = int_to_ptr.vmem [resolvable:$true] %s23
      %29 = dma.hbm_to_vmem [thread:$0]  %s0, 1024, %s24, [#allocation4], 128, 128, 8
    $region5: #{tpu_custom_call.1} parent=1 // pred_fallthru
      _
    // Predicated region
    $region6: #{tpu_custom_call.1} parent=1 // pred_check
      _
    $region7: #{tpu_custom_call.1} parent=1 // pred_check_branch
      %31 = sbr.rel (0) target = $region9
    $region8: #{tpu_custom_call.1} parent=1 // pred_region
      %s33 = ssub.s32 256, 256
      %34 = vsyncadd [#allocation7], %s33
      %s35 = sshll.u32 [#allocation6], 4
      %s36 = int_to_ptr.vmem [resolvable:$true] %s35
      %41 = dma.hbm_to_vmem [thread:$0]  %s1, 256, %s36, [#allocation7], 64, 64, 4
    $region9: #{tpu_custom_call.1} parent=1 // pred_fallthru
      _
    // Predicated region
    $region10: #{tpu_custom_call.1} parent=1 // pred_check
      _
    $region11: #{tpu_custom_call.1} parent=1 // pred_check_branch
      %43 = sbr.rel (0) target = $region13
    $region12: #{tpu_custom_call.1} parent=1 // pred_region
      %s45 = ssub.s32 256, 256
      %46 = vsyncadd [#allocation7], %s45
      %s47 = sshll.u32 [#allocation8], 4
      %s48 = int_to_ptr.vmem [resolvable:$true] %s47
      %53 = dma.hbm_to_vmem [thread:$0]  %s2, 256, %s48, [#allocation7], 64, 64, 4
    $region13: #{tpu_custom_call.1} parent=1 // pred_fallthru
      _
    // Predicated region
    $region14: #{tpu_custom_call.1} parent=1 // pred_check
      _
    $region15: #{tpu_custom_call.1} parent=1 // pred_check_branch
      %55 = sbr.rel (0) target = $region17
    $region16: #{tpu_custom_call.1} parent=1 // pred_region
      _
    $region17: #{tpu_custom_call.1} parent=1 // pred_fallthru
      _
    // Predicated region
    $region18: #{tpu_custom_call.1} parent=1 // pred_check
      _
    $region19: #{tpu_custom_call.1} parent=1 // pred_check_branch
      %57 = sbr.rel (0) target = $region21
    $region20: #{tpu_custom_call.1} parent=1 // pred_region
      _
    $region21: #{tpu_custom_call.1} parent=1 // pred_fallthru
      _
    // Predicated region
    $region22: #{tpu_custom_call.1} parent=1 // pred_check
      _
    $region23: #{tpu_custom_call.1} parent=1 // pred_check_branch
      %59 = sbr.rel (0) target = $region25
    $region24: #{tpu_custom_call.1} parent=1 // pred_region
      _
    $region25: #{tpu_custom_call.1} parent=1 // pred_fallthru
      _
    // Predicated region
    $region26: #{tpu_custom_call.1} parent=1 // pred_check
      _
    $region27: #{tpu_custom_call.1} parent=1 // pred_check_branch
      %61 = sbr.rel (0) target = $region29
    $region28: #{tpu_custom_call.1} parent=1 // pred_region
      %62 = dma.done [#allocation4], 1024
    $region29: #{tpu_custom_call.1} parent=1 // pred_fallthru
      _
    // Predicated region
    $region30: #{tpu_custom_call.1} parent=1 // pred_check
      _
    $region31: #{tpu_custom_call.1} parent=1 // pred_check_branch
      %64 = sbr.rel (0) target = $region33
    $region32: #{tpu_custom_call.1} parent=1 // pred_region
      %65 = dma.done [#allocation7], 256
    $region33: #{tpu_custom_call.1} parent=1 // pred_fallthru
      _
    // Predicated region
    $region34: #{tpu_custom_call.1} parent=1 // pred_check
      _
    $region35: #{tpu_custom_call.1} parent=1 // pred_check_branch
      %67 = sbr.rel (0) target = $region37
    $region36: #{tpu_custom_call.1} parent=1 // pred_region
      %68 = dma.done [#allocation7], 256
    $region37: #{tpu_custom_call.1} parent=1 // pred_fallthru
      _
    %p70 = scmp.eq.s32.totalorder 0, 0
    // Predicated region
    $region38: #{tpu_custom_call.1} parent=1 // pred_check
      %p71 = pneg %p70
    $region39: #{tpu_custom_call.1} parent=1 // pred_check_branch
      %73 = sbr.rel (%p71) target = $region41
    $region40: #{tpu_custom_call.1} parent=1 // pred_region
      %v74 = vld [vmem:[%s4] sm:$0xff]
      %vm75 = vcmask 261120
      %76 = vst.msk [vmem:[#allocation10] sm:$0xff] %vm75, %v74
      %v77 = vld [vmem:[%s5] sm:$0xff]
      %78 = vst.msk [vmem:[#allocation12] sm:$0xff] %vm75, %v77
    $region41: #{tpu_custom_call.1} parent=1 // pred_fallthru
      _
    %v79 = vld [vmem:[#allocation6] sm:$0xf]
    %v80 = vld [vmem:[#allocation6 + $0x4] sm:$0xf]
    %v81 = vld [vmem:[#allocation6 + $0x8] sm:$0xf]
    %v82 = vld [vmem:[#allocation6 + $0xc] sm:$0xf]
    %v83 = vld [vmem:[#allocation10] sm:$0xff]
    %v84 = vld [vmem:[#allocation12] sm:$0xff]
    %v85 = vld [vmem:[#allocation3] sm:$0xff]
    %v86 = vpack.c.bf16 %v83, %v83
    %v91 = vunpack.c.l.b16 %v79
    %v92 = vunpack.c.l.b16 %v80
    %v93 = vunpack.c.l.b16 %v81
    %v94 = vunpack.c.l.b16 %v82
    %v95 = vpack.c.b16 %v92, %v91
    %v96 = vpack.c.b16 %v94, %v93
    %vm99 = vcmask 261120
    %v101 = vsel %vm99, %v86, 0
    %103 = vmatprep.subr.bf16.mxu0 0
    %104 = vmatpush1.bf16.msra.mxu0 %v95
    %105 = vmatprep.subr.bf16.mxu0 0
    %106 = vmatpush1.bf16.msra.mxu0 %v96
    %107 = vmatprep.subr.bf16.mxu0 0
    %108 = vmatpush1.bf16.msra.mxu0 0
    %109 = vmatprep.subr.bf16.mxu0 0
    %110 = vmatpush1.bf16.msra.mxu0 0
    %111 = vmatprep.subr.bf16.mxu0 0
    %112 = vmatpush1.bf16.msra.mxu0 0
    %113 = vmatprep.subr.bf16.mxu0 0
    %114 = vmatpush1.bf16.msra.mxu0 0
    %115 = vmatprep.subr.bf16.mxu0 0
    %116 = vmatpush1.bf16.msra.mxu0 0
    %117 = vmatprep.subr.bf16.mxu0 0
    %118 = vmatpush1.bf16.msra.mxu0 0
    %119 = vmatprep.subr.bf16.mxu0 0
    %120 = vmatpush1.bf16.msra.mxu0 0
    %121 = vmatprep.subr.bf16.mxu0 0
    %122 = vmatpush1.bf16.msra.mxu0 0
    %123 = vmatprep.subr.bf16.mxu0 0
    %124 = vmatpush1.bf16.msra.mxu0 0
    %125 = vmatprep.subr.bf16.mxu0 0
    %126 = vmatpush1.bf16.msra.mxu0 0
    %127 = vmatprep.subr.bf16.mxu0 0
    %128 = vmatpush1.bf16.msra.mxu0 0
    %129 = vmatprep.subr.bf16.mxu0 0
    %130 = vmatpush1.bf16.msra.mxu0 0
    %131 = vmatprep.subr.bf16.mxu0 0
    %132 = vmatpush1.bf16.msra.mxu0 0
    %133 = vmatprep.subr.bf16.mxu0 0
    %134 = vmatpush1.bf16.msra.mxu0 0
    %135 = vmatprep.mubr.bf16.mxu0 0
    %136 = vmatmul.mubr.bf16.gmra.mrb[0].mxu0 %v101
    %v137 = vpop.f32.mrb[0].mxu0
    %v138 = vadd.f32 0.0, %v137
    %v139 = vpop.f32.mrb[0].mxu0
    %v140 = vpop.f32.mrb[0].mxu0
    %v141 = vpop.f32.mrb[0].mxu0
    %142 = vdwg.mxu0
    %v143 = vadd.f32 %v85, %v138
    %v144 = vxor.u32 %v143, 2147483648
    %v145 = vmul.f32 %v144, 1.442695
    %v146 = vpow.pop %v145
    %v147 = vadd.f32 %v146, 1.0
    %v148 = vrcp.pop %v147
    %v149 = vmul.f32 1.0, %v148
    %v150 = vtanh.pop %v143
    %152 = vrot.lane.b32.xlu0 %v84, 32
    %v153 = vpop.permute.xlu0 %152
    %v155 = vmul.f32 %v149, %v153
    %157 = vrot.lane.b32.xlu0 %v150, 64
    %v158 = vpop.permute.xlu0 %157
    %v160 = vmul.f32 %v149, %v158
    %162 = vrot.lane.b32.xlu0 %v160, 32
    %v163 = vpop.permute.xlu0 %162
    %v165 = vadd.f32 %v155, %v163
    %v166 = vtanh.pop %v165
    %168 = vrot.lane.b32.xlu0 %v166, 64
    %v169 = vpop.permute.xlu0 %168
    %v171 = vmul.f32 %v149, %v169
    %173 = vrot.lane.b32.xlu0 %v171, 32
    %v174 = vpop.permute.xlu0 %173
    %176 = vst.msk [vmem:[#allocation2] sm:$0xff] %vm99, %v174
    %s177 = scalar_lea.vmem [#allocation3], 8
    %v178 = vld [vmem:[%s177] sm:$0xff]
    %v179 = vpack.c.bf16 %v171, %v171
    %181 = vrot.lane.b32.xlu0 %v179, 32
    %v182 = vpop.permute.xlu0 %181
    %v184 = vsel %vm99, %v182, 0
    %186 = vmatprep.subr.bf16.mxu0 0
    %187 = vmatpush1.bf16.msra.mxu0 %v95
    %188 = vmatprep.subr.bf16.mxu0 0
    %189 = vmatpush1.bf16.msra.mxu0 %v96
    %190 = vmatprep.subr.bf16.mxu0 0
    %191 = vmatpush1.bf16.msra.mxu0 0
    %192 = vmatprep.subr.bf16.mxu0 0
    %193 = vmatpush1.bf16.msra.mxu0 0
    %194 = vmatprep.subr.bf16.mxu0 0
    %195 = vmatpush1.bf16.msra.mxu0 0
    %196 = vmatprep.subr.bf16.mxu0 0
    %197 = vmatpush1.bf16.msra.mxu0 0
    %198 = vmatprep.subr.bf16.mxu0 0
    %199 = vmatpush1.bf16.msra.mxu0 0
    %200 = vmatprep.subr.bf16.mxu0 0
    %201 = vmatpush1.bf16.msra.mxu0 0
    %202 = vmatprep.subr.bf16.mxu0 0
    %203 = vmatpush1.bf16.msra.mxu0 0
    %204 = vmatprep.subr.bf16.mxu0 0
    %205 = vmatpush1.bf16.msra.mxu0 0
    %206 = vmatprep.subr.bf16.mxu0 0
    %207 = vmatpush1.bf16.msra.mxu0 0
    %208 = vmatprep.subr.bf16.mxu0 0
    %209 = vmatpush1.bf16.msra.mxu0 0
    %210 = vmatprep.subr.bf16.mxu0 0
    %211 = vmatpush1.bf16.msra.mxu0 0
    %212 = vmatprep.subr.bf16.mxu0 0
    %213 = vmatpush1.bf16.msra.mxu0 0
    %214 = vmatprep.subr.bf16.mxu0 0
    %215 = vmatpush1.bf16.msra.mxu0 0
    %216 = vmatprep.subr.bf16.mxu0 0
    %217 = vmatpush1.bf16.msra.mxu0 0
    %218 = vmatprep.mubr.bf16.mxu0 0
    %219 = vmatmul.mubr.bf16.gmra.mrb[0].mxu0 %v184
    %v220 = vpop.f32.mrb[0].mxu0
    %v221 = vadd.f32 0.0, %v220
    %v222 = vpop.f32.mrb[0].mxu0
    %v223 = vpop.f32.mrb[0].mxu0
    %v224 = vpop.f32.mrb[0].mxu0
    %225 = vdwg.mxu0
    %v226 = vadd.f32 %v178, %v221
    %v227 = vxor.u32 %v226, 2147483648
    %v228 = vmul.f32 %v227, 1.442695
    %v229 = vpow.pop %v228
    %v230 = vadd.f32 %v229, 1.0
    %v231 = vrcp.pop %v230
    %v232 = vmul.f32 1.0, %v231
    %v233 = vtanh.pop %v226
    %v234 = vmul.f32 %v232, %v165
    %236 = vrot.lane.b32.xlu0 %v233, 64
    %v237 = vpop.permute.xlu0 %236
    %v239 = vmul.f32 %v232, %v237
    %241 = vrot.lane.b32.xlu0 %v239, 32
    %v242 = vpop.permute.xlu0 %241
    %v244 = vadd.f32 %v234, %v242
    %v245 = vtanh.pop %v244
    %247 = vrot.lane.b32.xlu0 %v245, 64
    %v248 = vpop.permute.xlu0 %247
    %v250 = vmul.f32 %v232, %v248
    %252 = vrot.lane.b32.xlu0 %v250, 32
    %v253 = vpop.permute.xlu0 %252
    %s255 = scalar_lea.vmem [#allocation2], 8
    %256 = vst.msk [vmem:[%s255] sm:$0xff] %vm99, %v253
    %s257 = scalar_lea.vmem [#allocation3], 16
    %v258 = vld [vmem:[%s257] sm:$0xff]
    %v259 = vpack.c.bf16 %v250, %v250
    %261 = vrot.lane.b32.xlu0 %v259, 32
    %v262 = vpop.permute.xlu0 %261
    %v264 = vsel %vm99, %v262, 0
    %266 = vmatprep.subr.bf16.mxu0 0
    %267 = vmatpush1.bf16.msra.mxu0 %v95
    %268 = vmatprep.subr.bf16.mxu0 0
    %269 = vmatpush1.bf16.msra.mxu0 %v96
    %270 = vmatprep.subr.bf16.mxu0 0
    %271 = vmatpush1.bf16.msra.mxu0 0
    %272 = vmatprep.subr.bf16.mxu0 0
    %273 = vmatpush1.bf16.msra.mxu0 0
    %274 = vmatprep.subr.bf16.mxu0 0
    %275 = vmatpush1.bf16.msra.mxu0 0
    %276 = vmatprep.subr.bf16.mxu0 0
    %277 = vmatpush1.bf16.msra.mxu0 0
    %278 = vmatprep.subr.bf16.mxu0 0
    %279 = vmatpush1.bf16.msra.mxu0 0
    %280 = vmatprep.subr.bf16.mxu0 0
    %281 = vmatpush1.bf16.msra.mxu0 0
    %282 = vmatprep.subr.bf16.mxu0 0
    %283 = vmatpush1.bf16.msra.mxu0 0
    %284 = vmatprep.subr.bf16.mxu0 0
    %285 = vmatpush1.bf16.msra.mxu0 0
    %286 = vmatprep.subr.bf16.mxu0 0
    %287 = vmatpush1.bf16.msra.mxu0 0
    %288 = vmatprep.subr.bf16.mxu0 0
    %289 = vmatpush1.bf16.msra.mxu0 0
    %290 = vmatprep.subr.bf16.mxu0 0
    %291 = vmatpush1.bf16.msra.mxu0 0
    %292 = vmatprep.subr.bf16.mxu0 0
    %293 = vmatpush1.bf16.msra.mxu0 0
    %294 = vmatprep.subr.bf16.mxu0 0
    %295 = vmatpush1.bf16.msra.mxu0 0
    %296 = vmatprep.subr.bf16.mxu0 0
    %297 = vmatpush1.bf16.msra.mxu0 0
    %298 = vmatprep.mubr.bf16.mxu0 0
    %299 = vmatmul.mubr.bf16.gmra.mrb[0].mxu0 %v264
    %v300 = vpop.f32.mrb[0].mxu0
    %v301 = vadd.f32 0.0, %v300
    %v302 = vpop.f32.mrb[0].mxu0
    %v303 = vpop.f32.mrb[0].mxu0
    %v304 = vpop.f32.mrb[0].mxu0
    %305 = vdwg.mxu0
    %v306 = vadd.f32 %v258, %v301
    %v307 = vxor.u32 %v306, 2147483648
    %v308 = vmul.f32 %v307, 1.442695
    %v309 = vpow.pop %v308
    %v310 = vadd.f32 %v309, 1.0
    %v311 = vrcp.pop %v310
    %v312 = vmul.f32 1.0, %v311
    %v313 = vtanh.pop %v306
    %v314 = vmul.f32 %v312, %v244
    %316 = vrot.lane.b32.xlu0 %v313, 64
    %v317 = vpop.permute.xlu0 %316
    %v319 = vmul.f32 %v312, %v317
    %321 = vrot.lane.b32.xlu0 %v319, 32
    %v322 = vpop.permute.xlu0 %321
    %v324 = vadd.f32 %v314, %v322
    %v325 = vtanh.pop %v324
    %327 = vrot.lane.b32.xlu0 %v325, 64
    %v328 = vpop.permute.xlu0 %327
    %v330 = vmul.f32 %v312, %v328
    %332 = vrot.lane.b32.xlu0 %v330, 32
    %v333 = vpop.permute.xlu0 %332
    %s335 = scalar_lea.vmem [#allocation2], 16
    %336 = vst.msk [vmem:[%s335] sm:$0xff] %vm99, %v333
    %s337 = scalar_lea.vmem [#allocation3], 24
    %v338 = vld [vmem:[%s337] sm:$0xff]
    %v339 = vpack.c.bf16 %v330, %v330
    %341 = vrot.lane.b32.xlu0 %v339, 32
    %v342 = vpop.permute.xlu0 %341
    %v344 = vsel %vm99, %v342, 0
    %346 = vmatprep.subr.bf16.mxu0 0
    %347 = vmatpush1.bf16.msra.mxu0 %v95
    %348 = vmatprep.subr.bf16.mxu0 0
    %349 = vmatpush1.bf16.msra.mxu0 %v96
    %350 = vmatprep.subr.bf16.mxu0 0
    %351 = vmatpush1.bf16.msra.mxu0 0
    %352 = vmatprep.subr.bf16.mxu0 0
    %353 = vmatpush1.bf16.msra.mxu0 0
    %354 = vmatprep.subr.bf16.mxu0 0
    %355 = vmatpush1.bf16.msra.mxu0 0
    %356 = vmatprep.subr.bf16.mxu0 0
    %357 = vmatpush1.bf16.msra.mxu0 0
    %358 = vmatprep.subr.bf16.mxu0 0
    %359 = vmatpush1.bf16.msra.mxu0 0
    %360 = vmatprep.subr.bf16.mxu0 0
    %361 = vmatpush1.bf16.msra.mxu0 0
    %362 = vmatprep.subr.bf16.mxu0 0
    %363 = vmatpush1.bf16.msra.mxu0 0
    %364 = vmatprep.subr.bf16.mxu0 0
    %365 = vmatpush1.bf16.msra.mxu0 0
    %366 = vmatprep.subr.bf16.mxu0 0
    %367 = vmatpush1.bf16.msra.mxu0 0
    %368 = vmatprep.subr.bf16.mxu0 0
    %369 = vmatpush1.bf16.msra.mxu0 0
    %370 = vmatprep.subr.bf16.mxu0 0
    %371 = vmatpush1.bf16.msra.mxu0 0
    %372 = vmatprep.subr.bf16.mxu0 0
    %373 = vmatpush1.bf16.msra.mxu0 0
    %374 = vmatprep.subr.bf16.mxu0 0
    %375 = vmatpush1.bf16.msra.mxu0 0
    %376 = vmatprep.subr.bf16.mxu0 0
    %377 = vmatpush1.bf16.msra.mxu0 0
    %378 = vmatprep.mubr.bf16.mxu0 0
    %379 = vmatmul.mubr.bf16.gmra.mrb[0].mxu0 %v344
    %v380 = vpop.f32.mrb[0].mxu0
    %v381 = vadd.f32 0.0, %v380
    %v382 = vpop.f32.mrb[0].mxu0
    %v383 = vpop.f32.mrb[0].mxu0
    %v384 = vpop.f32.mrb[0].mxu0
    %385 = vdwg.mxu0
    %v386 = vadd.f32 %v338, %v381
    %v387 = vxor.u32 %v386, 2147483648
    %v388 = vmul.f32 %v387, 1.442695
    %v389 = vpow.pop %v388
    %v390 = vadd.f32 %v389, 1.0
    %v391 = vrcp.pop %v390
    %v392 = vmul.f32 1.0, %v391
    %v393 = vtanh.pop %v386
    %v394 = vmul.f32 %v392, %v324
    %396 = vrot.lane.b32.xlu0 %v393, 64
    %v397 = vpop.permute.xlu0 %396
    %v399 = vmul.f32 %v392, %v397
    %401 = vrot.lane.b32.xlu0 %v399, 32
    %v402 = vpop.permute.xlu0 %401
    %v404 = vadd.f32 %v394, %v402
    %v405 = vtanh.pop %v404
    %407 = vrot.lane.b32.xlu0 %v405, 64
    %v408 = vpop.permute.xlu0 %407
    %v410 = vmul.f32 %v392, %v408
    %412 = vrot.lane.b32.xlu0 %v410, 32
    %v413 = vpop.permute.xlu0 %412
    %s415 = scalar_lea.vmem [#allocation2], 24
    %416 = vst.msk [vmem:[%s415] sm:$0xff] %vm99, %v413
    %s417 = scalar_lea.vmem [#allocation3], 32
    %v418 = vld [vmem:[%s417] sm:$0xff]
    %v419 = vpack.c.bf16 %v410, %v410
    %421 = vrot.lane.b32.xlu0 %v419, 32
    %v422 = vpop.permute.xlu0 %421
    %v424 = vsel %vm99, %v422, 0
    %426 = vmatprep.subr.bf16.mxu0 0
    %427 = vmatpush1.bf16.msra.mxu0 %v95
    %428 = vmatprep.subr.bf16.mxu0 0
    %429 = vmatpush1.bf16.msra.mxu0 %v96
    %430 = vmatprep.subr.bf16.mxu0 0
    %431 = vmatpush1.bf16.msra.mxu0 0
    %432 = vmatprep.subr.bf16.mxu0 0
    %433 = vmatpush1.bf16.msra.mxu0 0
    %434 = vmatprep.subr.bf16.mxu0 0
    %435 = vmatpush1.bf16.msra.mxu0 0
    %436 = vmatprep.subr.bf16.mxu0 0
    %437 = vmatpush1.bf16.msra.mxu0 0
    %438 = vmatprep.subr.bf16.mxu0 0
    %439 = vmatpush1.bf16.msra.mxu0 0
    %440 = vmatprep.subr.bf16.mxu0 0
    %441 = vmatpush1.bf16.msra.mxu0 0
    %442 = vmatprep.subr.bf16.mxu0 0
    %443 = vmatpush1.bf16.msra.mxu0 0
    %444 = vmatprep.subr.bf16.mxu0 0
    %445 = vmatpush1.bf16.msra.mxu0 0
    %446 = vmatprep.subr.bf16.mxu0 0
    %447 = vmatpush1.bf16.msra.mxu0 0
    %448 = vmatprep.subr.bf16.mxu0 0
    %449 = vmatpush1.bf16.msra.mxu0 0
    %450 = vmatprep.subr.bf16.mxu0 0
    %451 = vmatpush1.bf16.msra.mxu0 0
    %452 = vmatprep.subr.bf16.mxu0 0
    %453 = vmatpush1.bf16.msra.mxu0 0
    %454 = vmatprep.subr.bf16.mxu0 0
    %455 = vmatpush1.bf16.msra.mxu0 0
    %456 = vmatprep.subr.bf16.mxu0 0
    %457 = vmatpush1.bf16.msra.mxu0 0
    %458 = vmatprep.mubr.bf16.mxu0 0
    %459 = vmatmul.mubr.bf16.gmra.mrb[0].mxu0 %v424
    %v460 = vpop.f32.mrb[0].mxu0
    %v461 = vadd.f32 0.0, %v460
    %v462 = vpop.f32.mrb[0].mxu0
    %v463 = vpop.f32.mrb[0].mxu0
    %v464 = vpop.f32.mrb[0].mxu0
    %465 = vdwg.mxu0
    %v466 = vadd.f32 %v418, %v461
    %v467 = vxor.u32 %v466, 2147483648
    %v468 = vmul.f32 %v467, 1.442695
    %v469 = vpow.pop %v468
    %v470 = vadd.f32 %v469, 1.0
    %v471 = vrcp.pop %v470
    %v472 = vmul.f32 1.0, %v471
    %v473 = vtanh.pop %v466
    %v474 = vmul.f32 %v472, %v404
    %476 = vrot.lane.b32.xlu0 %v473, 64
    %v477 = vpop.permute.xlu0 %476
    %v479 = vmul.f32 %v472, %v477
    %481 = vrot.lane.b32.xlu0 %v479, 32
    %v482 = vpop.permute.xlu0 %481
    %v484 = vadd.f32 %v474, %v482
    %v485 = vtanh.pop %v484
    %487 = vrot.lane.b32.xlu0 %v485, 64
    %v488 = vpop.permute.xlu0 %487
    %v490 = vmul.f32 %v472, %v488
    %492 = vrot.lane.b32.xlu0 %v490, 32
    %v493 = vpop.permute.xlu0 %492
    %s495 = scalar_lea.vmem [#allocation2], 32
    %496 = vst.msk [vmem:[%s495] sm:$0xff] %vm99, %v493
    %s497 = scalar_lea.vmem [#allocation3], 40
    %v498 = vld [vmem:[%s497] sm:$0xff]
    %v499 = vpack.c.bf16 %v490, %v490
    %501 = vrot.lane.b32.xlu0 %v499, 32
    %v502 = vpop.permute.xlu0 %501
    %v504 = vsel %vm99, %v502, 0
    %506 = vmatprep.subr.bf16.mxu0 0
    %507 = vmatpush1.bf16.msra.mxu0 %v95
    %508 = vmatprep.subr.bf16.mxu0 0
    %509 = vmatpush1.bf16.msra.mxu0 %v96
    %510 = vmatprep.subr.bf16.mxu0 0
    %511 = vmatpush1.bf16.msra.mxu0 0
    %512 = vmatprep.subr.bf16.mxu0 0
    %513 = vmatpush1.bf16.msra.mxu0 0
    %514 = vmatprep.subr.bf16.mxu0 0
    %515 = vmatpush1.bf16.msra.mxu0 0
    %516 = vmatprep.subr.bf16.mxu0 0
    %517 = vmatpush1.bf16.msra.mxu0 0
    %518 = vmatprep.subr.bf16.mxu0 0
    %519 = vmatpush1.bf16.msra.mxu0 0
    %520 = vmatprep.subr.bf16.mxu0 0
    %521 = vmatpush1.bf16.msra.mxu0 0
    %522 = vmatprep.subr.bf16.mxu0 0
    %523 = vmatpush1.bf16.msra.mxu0 0
    %524 = vmatprep.subr.bf16.mxu0 0
    %525 = vmatpush1.bf16.msra.mxu0 0
    %526 = vmatprep.subr.bf16.mxu0 0
    %527 = vmatpush1.bf16.msra.mxu0 0
    %528 = vmatprep.subr.bf16.mxu0 0
    %529 = vmatpush1.bf16.msra.mxu0 0
    %530 = vmatprep.subr.bf16.mxu0 0
    %531 = vmatpush1.bf16.msra.mxu0 0
    %532 = vmatprep.subr.bf16.mxu0 0
    %533 = vmatpush1.bf16.msra.mxu0 0
    %534 = vmatprep.subr.bf16.mxu0 0
    %535 = vmatpush1.bf16.msra.mxu0 0
    %536 = vmatprep.subr.bf16.mxu0 0
    %537 = vmatpush1.bf16.msra.mxu0 0
    %538 = vmatprep.mubr.bf16.mxu0 0
    %539 = vmatmul.mubr.bf16.gmra.mrb[0].mxu0 %v504
    %v540 = vpop.f32.mrb[0].mxu0
    %v541 = vadd.f32 0.0, %v540
    %v542 = vpop.f32.mrb[0].mxu0
    %v543 = vpop.f32.mrb[0].mxu0
    %v544 = vpop.f32.mrb[0].mxu0
    %545 = vdwg.mxu0
    %v546 = vadd.f32 %v498, %v541
    %v547 = vxor.u32 %v546, 2147483648
    %v548 = vmul.f32 %v547, 1.442695
    %v549 = vpow.pop %v548
    %v550 = vadd.f32 %v549, 1.0
    %v551 = vrcp.pop %v550
    %v552 = vmul.f32 1.0, %v551
    %v553 = vtanh.pop %v546
    %v554 = vmul.f32 %v552, %v484
    %556 = vrot.lane.b32.xlu0 %v553, 64
    %v557 = vpop.permute.xlu0 %556
    %v559 = vmul.f32 %v552, %v557
    %561 = vrot.lane.b32.xlu0 %v559, 32
    %v562 = vpop.permute.xlu0 %561
    %v564 = vadd.f32 %v554, %v562
    %v565 = vtanh.pop %v564
    %567 = vrot.lane.b32.xlu0 %v565, 64
    %v568 = vpop.permute.xlu0 %567
    %v570 = vmul.f32 %v552, %v568
    %572 = vrot.lane.b32.xlu0 %v570, 32
    %v573 = vpop.permute.xlu0 %572
    %s575 = scalar_lea.vmem [#allocation2], 40
    %576 = vst.msk [vmem:[%s575] sm:$0xff] %vm99, %v573
    %s577 = scalar_lea.vmem [#allocation3], 48
    %v578 = vld [vmem:[%s577] sm:$0xff]
    %v579 = vpack.c.bf16 %v570, %v570
    %581 = vrot.lane.b32.xlu0 %v579, 32
    %v582 = vpop.permute.xlu0 %581
    %v584 = vsel %vm99, %v582, 0
    %586 = vmatprep.subr.bf16.mxu0 0
    %587 = vmatpush1.bf16.msra.mxu0 %v95
    %588 = vmatprep.subr.bf16.mxu0 0
    %589 = vmatpush1.bf16.msra.mxu0 %v96
    %590 = vmatprep.subr.bf16.mxu0 0
    %591 = vmatpush1.bf16.msra.mxu0 0
    %592 = vmatprep.subr.bf16.mxu0 0
    %593 = vmatpush1.bf16.msra.mxu0 0
    %594 = vmatprep.subr.bf16.mxu0 0
    %595 = vmatpush1.bf16.msra.mxu0 0
    %596 = vmatprep.subr.bf16.mxu0 0
    %597 = vmatpush1.bf16.msra.mxu0 0
    %598 = vmatprep.subr.bf16.mxu0 0
    %599 = vmatpush1.bf16.msra.mxu0 0
    %600 = vmatprep.subr.bf16.mxu0 0
    %601 = vmatpush1.bf16.msra.mxu0 0
    %602 = vmatprep.subr.bf16.mxu0 0
    %603 = vmatpush1.bf16.msra.mxu0 0
    %604 = vmatprep.subr.bf16.mxu0 0
    %605 = vmatpush1.bf16.msra.mxu0 0
    %606 = vmatprep.subr.bf16.mxu0 0
    %607 = vmatpush1.bf16.msra.mxu0 0
    %608 = vmatprep.subr.bf16.mxu0 0
    %609 = vmatpush1.bf16.msra.mxu0 0
    %610 = vmatprep.subr.bf16.mxu0 0
    %611 = vmatpush1.bf16.msra.mxu0 0
    %612 = vmatprep.subr.bf16.mxu0 0
    %613 = vmatpush1.bf16.msra.mxu0 0
    %614 = vmatprep.subr.bf16.mxu0 0
    %615 = vmatpush1.bf16.msra.mxu0 0
    %616 = vmatprep.subr.bf16.mxu0 0
    %617 = vmatpush1.bf16.msra.mxu0 0
    %618 = vmatprep.mubr.bf16.mxu0 0
    %619 = vmatmul.mubr.bf16.gmra.mrb[0].mxu0 %v584
    %v620 = vpop.f32.mrb[0].mxu0
    %v621 = vadd.f32 0.0, %v620
    %v622 = vpop.f32.mrb[0].mxu0
    %v623 = vpop.f32.mrb[0].mxu0
    %v624 = vpop.f32.mrb[0].mxu0
    %625 = vdwg.mxu0
    %v626 = vadd.f32 %v578, %v621
    %v627 = vxor.u32 %v626, 2147483648
    %v628 = vmul.f32 %v627, 1.442695
    %v629 = vpow.pop %v628
    %v630 = vadd.f32 %v629, 1.0
    %v631 = vrcp.pop %v630
    %v632 = vmul.f32 1.0, %v631
    %v633 = vtanh.pop %v626
    %v634 = vmul.f32 %v632, %v564
    %636 = vrot.lane.b32.xlu0 %v633, 64
    %v637 = vpop.permute.xlu0 %636
    %v639 = vmul.f32 %v632, %v637
    %641 = vrot.lane.b32.xlu0 %v639, 32
    %v642 = vpop.permute.xlu0 %641
    %v644 = vadd.f32 %v634, %v642
    %v645 = vtanh.pop %v644
    %647 = vrot.lane.b32.xlu0 %v645, 64
    %v648 = vpop.permute.xlu0 %647
    %v650 = vmul.f32 %v632, %v648
    %652 = vrot.lane.b32.xlu0 %v650, 32
    %v653 = vpop.permute.xlu0 %652
    %s655 = scalar_lea.vmem [#allocation2], 48
    %656 = vst.msk [vmem:[%s655] sm:$0xff] %vm99, %v653
    %s657 = scalar_lea.vmem [#allocation3], 56
    %v658 = vld [vmem:[%s657] sm:$0xff]
    %v659 = vpack.c.bf16 %v650, %v650
    %661 = vrot.lane.b32.xlu0 %v659, 32
    %v662 = vpop.permute.xlu0 %661
    %v664 = vsel %vm99, %v662, 0
    %666 = vmatprep.subr.bf16.mxu0 0
    %667 = vmatpush1.bf16.msra.mxu0 %v95
    %668 = vmatprep.subr.bf16.mxu0 0
    %669 = vmatpush1.bf16.msra.mxu0 %v96
    %670 = vmatprep.subr.bf16.mxu0 0
    %671 = vmatpush1.bf16.msra.mxu0 0
    %672 = vmatprep.subr.bf16.mxu0 0
    %673 = vmatpush1.bf16.msra.mxu0 0
    %674 = vmatprep.subr.bf16.mxu0 0
    %675 = vmatpush1.bf16.msra.mxu0 0
    %676 = vmatprep.subr.bf16.mxu0 0
    %677 = vmatpush1.bf16.msra.mxu0 0
    %678 = vmatprep.subr.bf16.mxu0 0
    %679 = vmatpush1.bf16.msra.mxu0 0
    %680 = vmatprep.subr.bf16.mxu0 0
    %681 = vmatpush1.bf16.msra.mxu0 0
    %682 = vmatprep.subr.bf16.mxu0 0
    %683 = vmatpush1.bf16.msra.mxu0 0
    %684 = vmatprep.subr.bf16.mxu0 0
    %685 = vmatpush1.bf16.msra.mxu0 0
    %686 = vmatprep.subr.bf16.mxu0 0
    %687 = vmatpush1.bf16.msra.mxu0 0
    %688 = vmatprep.subr.bf16.mxu0 0
    %689 = vmatpush1.bf16.msra.mxu0 0
    %690 = vmatprep.subr.bf16.mxu0 0
    %691 = vmatpush1.bf16.msra.mxu0 0
    %692 = vmatprep.subr.bf16.mxu0 0
    %693 = vmatpush1.bf16.msra.mxu0 0
    %694 = vmatprep.subr.bf16.mxu0 0
    %695 = vmatpush1.bf16.msra.mxu0 0
    %696 = vmatprep.subr.bf16.mxu0 0
    %697 = vmatpush1.bf16.msra.mxu0 0
    %698 = vmatprep.mubr.bf16.mxu0 0
    %699 = vmatmul.mubr.bf16.gmra.mrb[0].mxu0 %v664
    %v700 = vpop.f32.mrb[0].mxu0
    %v701 = vadd.f32 0.0, %v700
    %v702 = vpop.f32.mrb[0].mxu0
    %v703 = vpop.f32.mrb[0].mxu0
    %v704 = vpop.f32.mrb[0].mxu0
    %705 = vdwg.mxu0
    %v706 = vadd.f32 %v658, %v701
    %v707 = vxor.u32 %v706, 2147483648
    %v708 = vmul.f32 %v707, 1.442695
    %v709 = vpow.pop %v708
    %v710 = vadd.f32 %v709, 1.0
    %v711 = vrcp.pop %v710
    %v712 = vmul.f32 1.0, %v711
    %v713 = vtanh.pop %v706
    %v714 = vmul.f32 %v712, %v644
    %716 = vrot.lane.b32.xlu0 %v713, 64
    %v717 = vpop.permute.xlu0 %716
    %v719 = vmul.f32 %v712, %v717
    %721 = vrot.lane.b32.xlu0 %v719, 32
    %v722 = vpop.permute.xlu0 %721
    %v724 = vadd.f32 %v714, %v722
    %v725 = vtanh.pop %v724
    %727 = vrot.lane.b32.xlu0 %v725, 64
    %v728 = vpop.permute.xlu0 %727
    %v730 = vmul.f32 %v712, %v728
    %732 = vrot.lane.b32.xlu0 %v730, 32
    %v733 = vpop.permute.xlu0 %732
    %s735 = scalar_lea.vmem [#allocation2], 56
    %736 = vst.msk [vmem:[%s735] sm:$0xff] %vm99, %v733
    %737 = vst.msk [vmem:[#allocation10] sm:$0xff] %vm99, %v733
    %739 = vrot.lane.b32.xlu0 %v724, 96
    %v740 = vpop.permute.xlu0 %739
    %742 = vst.msk [vmem:[#allocation12] sm:$0xff] %vm99, %v740
    %v743 = vld [vmem:[#allocation2] sm:$0xff]
    %v744 = vld [vmem:[#allocation2 + $0x8] sm:$0xff]
    %v745 = vld [vmem:[#allocation2 + $0x10] sm:$0xff]
    %v746 = vld [vmem:[#allocation2 + $0x18] sm:$0xff]
    %v747 = vld [vmem:[#allocation2 + $0x20] sm:$0xff]
    %v748 = vld [vmem:[#allocation2 + $0x28] sm:$0xff]
    %v749 = vld [vmem:[#allocation2 + $0x30] sm:$0xff]
    %v750 = vld [vmem:[#allocation2 + $0x38] sm:$0xff]
    %v751 = vpack.c.bf16 %v744, %v743
    %v752 = vpack.c.bf16 %v746, %v745
    %v753 = vpack.c.bf16 %v748, %v747
    %v754 = vpack.c.bf16 %v750, %v749
    %v755 = vld [vmem:[#allocation8] sm:$0xf]
    %v756 = vld [vmem:[#allocation8 + $0x4] sm:$0xf]
    %v757 = vld [vmem:[#allocation8 + $0x8] sm:$0xf]
    %v758 = vld [vmem:[#allocation8 + $0xc] sm:$0xf]
    %v759 = vld [vmem:[%s3] sm:$0x1]
    %v761 = vlaneseq
    %v762 = vshrl.u32 %v761, 7
    %v763 = vsub.s32 0, %v762
    %v764 = vrot.slane %v759, %v763
    %v770 = vunpack.c.l.b16 %v755
    %v771 = vunpack.c.l.b16 %v756
    %v772 = vunpack.c.l.b16 %v757
    %v773 = vunpack.c.l.b16 %v758
    %v774 = vpack.c.b16 %v771, %v770
    %v775 = vpack.c.b16 %v773, %v772
    %v779 = vsel %vm99, %v751, 0
    %v782 = vsel %vm99, %v752, 0
    %v785 = vsel %vm99, %v753, 0
    %v788 = vsel %vm99, %v754, 0
    %790 = vmatprep.subr.bf16.mxu0 0
    %791 = vmatpush1.bf16.msra.mxu0 %v774
    %792 = vmatprep.subr.bf16.mxu0 0
    %793 = vmatpush1.bf16.msra.mxu0 %v775
    %794 = vmatprep.subr.bf16.mxu0 0
    %795 = vmatpush1.bf16.msra.mxu0 0
    %796 = vmatprep.subr.bf16.mxu0 0
    %797 = vmatpush1.bf16.msra.mxu0 0
    %798 = vmatprep.subr.bf16.mxu0 0
    %799 = vmatpush1.bf16.msra.mxu0 0
    %800 = vmatprep.subr.bf16.mxu0 0
    %801 = vmatpush1.bf16.msra.mxu0 0
    %802 = vmatprep.subr.bf16.mxu0 0
    %803 = vmatpush1.bf16.msra.mxu0 0
    %804 = vmatprep.subr.bf16.mxu0 0
    %805 = vmatpush1.bf16.msra.mxu0 0
    %806 = vmatprep.subr.bf16.mxu0 0
    %807 = vmatpush1.bf16.msra.mxu0 0
    %808 = vmatprep.subr.bf16.mxu0 0
    %809 = vmatpush1.bf16.msra.mxu0 0
    %810 = vmatprep.subr.bf16.mxu0 0
    %811 = vmatpush1.bf16.msra.mxu0 0
    %812 = vmatprep.subr.bf16.mxu0 0
    %813 = vmatpush1.bf16.msra.mxu0 0
    %814 = vmatprep.subr.bf16.mxu0 0
    %815 = vmatpush1.bf16.msra.mxu0 0
    %816 = vmatprep.subr.bf16.mxu0 0
    %817 = vmatpush1.bf16.msra.mxu0 0
    %818 = vmatprep.subr.bf16.mxu0 0
    %819 = vmatpush1.bf16.msra.mxu0 0
    %820 = vmatprep.subr.bf16.mxu0 0
    %821 = vmatpush1.bf16.msra.mxu0 0
    %822 = vmatprep.mubr.bf16.mxu0 0
    %823 = vmatmul.mubr.bf16.gmra.mrb[0].mxu0 %v779
    %v824 = vpop.f32.mrb[0].mxu0
    %v825 = vadd.f32 %v764, %v824
    %v826 = vpop.f32.mrb[0].mxu0
    %v827 = vpop.f32.mrb[0].mxu0
    %v828 = vadd.f32 %v764, %v827
    %v829 = vpop.f32.mrb[0].mxu0
    %830 = vmatprep.mubr.bf16.mxu0 0
    %831 = vmatmul.mubr.bf16.gmra.mrb[0].mxu0 %v782
    %v832 = vpop.f32.mrb[0].mxu0
    %v833 = vadd.f32 %v764, %v832
    %v834 = vpop.f32.mrb[0].mxu0
    %v835 = vpop.f32.mrb[0].mxu0
    %v836 = vadd.f32 %v764, %v835
    %v837 = vpop.f32.mrb[0].mxu0
    %838 = vmatprep.mubr.bf16.mxu0 0
    %839 = vmatmul.mubr.bf16.gmra.mrb[0].mxu0 %v785
    %v840 = vpop.f32.mrb[0].mxu0
    %v841 = vadd.f32 %v764, %v840
    %v842 = vpop.f32.mrb[0].mxu0
    %v843 = vpop.f32.mrb[0].mxu0
    %v844 = vadd.f32 %v764, %v843
    %v845 = vpop.f32.mrb[0].mxu0
    %846 = vmatprep.mubr.bf16.mxu0 0
    %847 = vmatmul.mubr.bf16.gmra.mrb[0].mxu0 %v788
    %v848 = vpop.f32.mrb[0].mxu0
    %v849 = vadd.f32 %v764, %v848
    %v850 = vpop.f32.mrb[0].mxu0
    %v851 = vpop.f32.mrb[0].mxu0
    %v852 = vadd.f32 %v764, %v851
    %v853 = vpop.f32.mrb[0].mxu0
    %854 = vdwg.mxu0
    %855 = vst [vmem:[#allocation9] sm:$0xff] %v825
    %856 = vst [vmem:[#allocation9 + $0x8] sm:$0xff] %v828
    %857 = vst [vmem:[#allocation9 + $0x10] sm:$0xff] %v833
    %858 = vst [vmem:[#allocation9 + $0x18] sm:$0xff] %v836
    %859 = vst [vmem:[#allocation9 + $0x20] sm:$0xff] %v841
    %860 = vst [vmem:[#allocation9 + $0x28] sm:$0xff] %v844
    %861 = vst [vmem:[#allocation9 + $0x30] sm:$0xff] %v849
    %862 = vst [vmem:[#allocation9 + $0x38] sm:$0xff] %v852
    // Predicated region
    $region42: #{tpu_custom_call.1} parent=1 // pred_check
      _
    $region43: #{tpu_custom_call.1} parent=1 // pred_check_branch
      %864 = sbr.rel (0) target = $region45
    $region44: #{tpu_custom_call.1} parent=1 // pred_region
      %s866 = ssub.s32 1024, 1024
      %867 = vsyncadd [#allocation5], %s866
      %s868 = sshll.u32 [#allocation9], 4
      %s869 = int_to_ptr.vmem [resolvable:$true] %s868
      %874 = dma.vmem_to_hbm [thread:$0]  %s869, 1024, %s6, [#allocation5], 128, 128, 8
    $region45: #{tpu_custom_call.1} parent=1 // pred_fallthru
      _
    // Predicated region
    $region46: #{tpu_custom_call.1} parent=1 // pred_check
      _
    $region47: #{tpu_custom_call.1} parent=1 // pred_check_branch
      %876 = sbr.rel (0) target = $region49
    $region48: #{tpu_custom_call.1} parent=1 // pred_region
      %s878 = ssub.s32 128, 128
      %879 = vsyncadd [#allocation11], %s878
      %s881 = sshll.u32 [#allocation10], 4
      %s882 = int_to_ptr.vmem [resolvable:$true] %s881
      %884 = dma.vmem_to_hbm [thread:$0]  %s882, 128, %s7, [#allocation11]
    $region49: #{tpu_custom_call.1} parent=1 // pred_fallthru
      _
    // Predicated region
    $region50: #{tpu_custom_call.1} parent=1 // pred_check
      _
    $region51: #{tpu_custom_call.1} parent=1 // pred_check_branch
      %886 = sbr.rel (0) target = $region53
    $region52: #{tpu_custom_call.1} parent=1 // pred_region
      %s888 = ssub.s32 128, 128
      %889 = vsyncadd [#allocation11], %s888
      %s891 = sshll.u32 [#allocation12], 4
      %s892 = int_to_ptr.vmem [resolvable:$true] %s891
      %894 = dma.vmem_to_hbm [thread:$0]  %s892, 128, %s8, [#allocation11]
    $region53: #{tpu_custom_call.1} parent=1 // pred_fallthru
      _
    // Predicated region
    $region54: #{tpu_custom_call.1} parent=1 // pred_check
      _
    $region55: #{tpu_custom_call.1} parent=1 // pred_check_branch
      %896 = sbr.rel (0) target = $region57
    $region56: #{tpu_custom_call.1} parent=1 // pred_region
      %897 = dma.done [#allocation5], 1024
    $region57: #{tpu_custom_call.1} parent=1 // pred_fallthru
      _
    // Predicated region
    $region58: #{tpu_custom_call.1} parent=1 // pred_check
      _
    $region59: #{tpu_custom_call.1} parent=1 // pred_check_branch
      %899 = sbr.rel (0) target = $region61
    $region60: #{tpu_custom_call.1} parent=1 // pred_region
      %900 = dma.done [#allocation11], 128
    $region61: #{tpu_custom_call.1} parent=1 // pred_fallthru
      _
    // Predicated region
    $region62: #{tpu_custom_call.1} parent=1 // pred_check
      _
    $region63: #{tpu_custom_call.1} parent=1 // pred_check_branch
      %902 = sbr.rel (0) target = $region65
    $region64: #{tpu_custom_call.1} parent=1 // pred_region
      %903 = dma.done [#allocation11], 128
    $region65: #{tpu_custom_call.1} parent=1 // pred_fallthru
      _
    %904 = vsyncpa [#allocation4], 1
    %905 = vsyncpa [#allocation7], 1
    %906 = vsyncpa [#allocation5], 1
    %907 = vsyncpa [#allocation11], 1

</llo_original>
